<compile_context>
chip_gen: v7x
topology: tpu7x:2x2x1
jax: 0.10.0
libtpu: 0.0.40
codegen_flags: <defaults>
</compile_context>

<pallas_src>
import functools
import math

import jax
import jax.numpy as jnp
import numpy as np
from jax.experimental import pallas as pl
from jax.experimental.pallas import tpu as pltpu


def _shift_lanes(x, off, out_len, total_len):
    """y[:, i] = x[:, (i + off) % total_len] for i in [0, out_len).  `off` static.

    Wrapped lanes are only ever read for source positions that the per-tap H/W
    masks zero out, so the modular wraparound never leaks wrong data.
    """
    start = off % total_len
    if start + out_len <= total_len:
        return x[:, start:start + out_len]
    if total_len % 128 == 0:
        # Single XLU lane rotation instead of slice+slice+concat.
        return pltpu.roll(x, total_len - start, axis=1)[:, :out_len]
    n_first = total_len - start
    return jnp.concatenate([x[:, start:], x[:, :out_len - n_first]], axis=1)


def _crosshair_kernel(x_hbm, wf_ref, b_ref, mask_ref, out_ref,
                      xbuf, copy_sem, slab_ref, *,
                      tap_info, group, cin, d_tile, n_d_tiles, pad, hw,
                      l_out, lp, lane_hint):
    # x_hbm   : (N, Cin, D*H*W)     unpadded input, left in HBM (manual halo DMA)
    # wf_ref  : (Cout, T_pad*Cin)   fused cross-hair weights (zero-padded taps)
    # b_ref   : (Cout, 1)           combined bias bx+by+bz (f32)
    # mask_ref: (T_pad, l_out)      per-tap H/W validity masks over output lanes
    # out_ref : (1, Cout, l_out)    lane-dense output tile
    # xbuf    : (2, Cin, lp)        double-buffered halo'd input tile
    # slab_ref: (T_pad*Cin, l_out)  im2col-style activation slab for the matmul
    n = pl.program_id(0)
    dt = pl.program_id(1)
    slot = dt % 2
    halo = pad * hw
    body = d_tile * hw
    use_hint = (lane_hint >= 128) and (lane_hint % 128 == 0)

    def _hint(v):
        return pl.multiple_of(v, lane_hint) if use_hint else v

    def desc(kind, d_idx, buf_slot):
        # One fixed-size DMA per tile kind; the missing D-halo planes of
        # boundary tiles are zero-filled in VMEM below (this replaces the
        # former wrapper-side jnp.pad pass over the whole volume).
        if kind == "full":            # interior: planes [dt*td - p, dt*td + td + p)
            src_lo, sz, dst_lo = _hint((d_idx * d_tile - pad) * hw), lp, 0
        elif kind == "first":         # planes [0, td + p)
            src_lo, sz, dst_lo = 0, body + halo, halo
        elif kind == "last":          # planes [dt*td - p, D)
            src_lo, sz, dst_lo = _hint((d_idx * d_tile - pad) * hw), body + halo, 0
        else:                         # "only" (single D tile): planes [0, D)
            src_lo, sz, dst_lo = 0, body, halo
        src = x_hbm.at[n, pl.ds(0, cin), pl.ds(src_lo, sz)]
        if dst_lo == 0 and sz == lp:
            dst = xbuf.at[buf_slot]
        else:
            dst = xbuf.at[buf_slot, pl.ds(0, cin), pl.ds(dst_lo, sz)]
        return pltpu.make_async_copy(src, dst, copy_sem.at[buf_slot])

    first_kind = "only" if n_d_tiles == 1 else "first"

    # Prime the double buffer at the first D-tile of every batch item.
    # TODO(synk): prefetch across the batch boundary to hide this first fetch.
    @pl.when(dt == 0)
    def _():
        desc(first_kind, 0, 0).start()

    # Prefetch the next D-tile of this batch item while computing the current.
    if n_d_tiles > 2:
        @pl.when(dt + 1 < n_d_tiles - 1)
        def _():
            desc("full", dt + 1, 1 - slot).start()
    if n_d_tiles > 1:
        @pl.when(dt + 1 == n_d_tiles - 1)
        def _():
            desc("last", dt + 1, 1 - slot).start()

    # Wait for the current tile (wait descriptor size must match the start).
    if n_d_tiles == 1:
        desc("only", dt, slot).wait()
    else:
        @pl.when(dt == 0)
        def _():
            desc("first", dt, slot).wait()

        @pl.when(dt == n_d_tiles - 1)
        def _():
            desc("last", dt, slot).wait()

        if n_d_tiles > 2:
            @pl.when((dt > 0) & (dt < n_d_tiles - 1))
            def _():
                desc("full", dt, slot).wait()

    # Zero the missing D-halo planes of boundary tiles (the buffer slot of the
    # first / last D-tile is statically known, so these are static stores).
    if pad > 0:
        @pl.when(dt == 0)
        def _():
            xbuf[0, :, 0:halo] = jnp.zeros((cin, halo), dtype=xbuf.dtype)

        last_slot = (n_d_tiles - 1) % 2

        @pl.when(dt == n_d_tiles - 1)
        def _():
            xbuf[last_slot, :, halo + body:lp] = jnp.zeros((cin, halo),
                                                           dtype=xbuf.dtype)

    xt = xbuf[slot]                                             # (Cin, lp)

    # Build the fused activation slab: one tile-aligned (group*Cin)-row store
    # per tap group.  Pure-D taps skip the mask multiply; padded taps are zero.
    n_groups = len(tap_info) // group
    for g in range(n_groups):
        parts = []
        for j in range(group):
            t = g * group + j
            info = tap_info[t]
            if info is None:
                parts.append(jnp.zeros((cin, l_out), dtype=xt.dtype))
            else:
                off, needs_mask = info
                sh = _shift_lanes(xt, off, l_out, lp)
                if needs_mask:
                    sh = sh * mask_ref[pl.ds(t, 1), :]
                parts.append(sh)
        blk = parts[0] if group == 1 else jnp.concatenate(parts, axis=0)
        slab_ref[g * group * cin:(g + 1) * group * cin, :] = blk

    # Single MXU contraction over all taps x input channels (f32 accumulation).
    acc = jnp.dot(wf_ref[...], slab_ref[...],
                  preferred_element_type=jnp.float32)           # (Cout, l_out)
    acc = acc + b_ref[...]
    out_ref[0] = acc.astype(out_ref.dtype)


def _vmem_budget_bytes():
    """Generation-aware VMEM budget (v7x: 64 MiB/core, v5e/v6e: 128 MiB)."""
    try:
        cap = getattr(pltpu.get_tpu_info(), "vmem_capacity_bytes", None)
    except Exception:
        cap = None
    if not cap:
        cap = 64 << 20                       # conservative default (v7x per-core)
    return (3 * int(cap)) // 4               # headroom for Mosaic-internal scratch


def _pick_d_tile(D, HW, cin, cout, t_pad, p, in_item, out_item, budget):
    """Largest divisor of D whose per-step VMEM footprint fits the budget,
    honoring the lane-alignment constraint of the output BlockSpec."""
    def usage(td):
        l_out = td * HW
        lp = (td + 2 * p) * HW
        return (2 * cin * lp * in_item               # double-buffered halo'd input
                + t_pad * cin * l_out * in_item      # activation slab (dominant)
                + 2 * cout * l_out * out_item        # double-buffered output block
                + 2 * t_pad * l_out * in_item        # tap-mask block
                + 2 * cout * t_pad * cin * in_item   # fused weights
                + 2 * cout * 4)                      # bias

    valid = [td for td in range(1, D + 1)
             if D % td == 0 and (td == D or ((td * HW) % 128 == 0 and td >= p))]
    fitting = [td for td in valid if usage(td) <= budget]
    return max(fitting) if fitting else min(valid)


def conv3d_ch(x_ncdhw, wx, wy, wz, bx, by, bz, *, kernel_size,
              d_tile=None, compute_dtype=None):
    """Cross-hair 3D conv.  x: (N, Cin, D, H, W) NCDHW; weights in PyTorch OIDHW."""
    N, Cin, D, H, W = x_ncdhw.shape
    Cout = wx.shape[0]
    K = kernel_size
    assert K % 2 == 1, "padding='same' with stride 1 assumes an odd kernel_size"
    p = K // 2
    HW = H * W

    out_dtype = x_ncdhw.dtype
    compute_dtype = jnp.dtype(out_dtype if compute_dtype is None else compute_dtype)
    in_item = compute_dtype.itemsize
    out_item = jnp.dtype(out_dtype).itemsize

    # Fused cross-hair weight: one (Cout, Cin) block per distinct spatial tap
    # (dd, dh, dw), merging taps the three convs share.
    blocks = {}

    def _add(off, blk):
        blocks[off] = blk if off not in blocks else blocks[off] + blk

    for kd in range(K):
        for kw in range(K):
            _add((kd, p, kw), wx[:, :, kd, 0, kw])      # conv kernel (K, 1, K)
    for kd in range(K):
        for kh in range(K):
            _add((kd, kh, p), wy[:, :, kd, kh, 0])      # conv kernel (K, K, 1)
    for kh in range(K):
        for kw in range(K):
            _add((p, kh, kw), wz[:, :, 0, kh, kw])      # conv kernel (1, K, K)

    tap_offsets = sorted(blocks.keys())
    T = len(tap_offsets)

    # Group taps so every slab store covers a full sublane tile (8 rows f32 /
    # 16 rows bf16); pad T with zero taps + zero weight columns to a multiple.
    sub = (8 * 4) // in_item
    group = sub // math.gcd(Cin, sub)
    T_pad = ((T + group - 1) // group) * group

    budget = _vmem_budget_bytes()
    if d_tile is None:
        d_tile = _pick_d_tile(D, HW, Cin, Cout, T_pad, p, in_item, out_item, budget)
    assert D % d_tile == 0, "d_tile must divide D"
    assert d_tile == D or (d_tile * HW) % 128 == 0, (
        "d_tile*H*W must be a multiple of 128 (or d_tile == D)")
    assert d_tile == D or d_tile >= p, "need d_tile >= kernel_size//2 when tiling D"
    n_d_tiles = D // d_tile
    l_out = d_tile * HW
    lp = (d_tile + 2 * p) * HW

    wf_cols = [blocks[o] for o in tap_offsets]
    wf_cols += [jnp.zeros((Cout, Cin), wx.dtype)] * (T_pad - T)
    wf = jnp.concatenate(wf_cols, axis=1).astype(compute_dtype)    # (Cout, T_pad*Cin)
    b_total = (bx + by + bz).reshape(Cout, 1).astype(jnp.float32)

    # Per-tap 0/1 H/W validity masks over one output tile's lanes; pure-D taps
    # (dh == dw == p) need no mask, padded taps get an all-zero row.
    fo = np.arange(l_out)
    h_idx = (fo // W) % H
    w_idx = fo % W
    tap_info = []
    mask_rows = []
    for (dd, dh, dw) in tap_offsets:
        off = dd * HW + (dh - p) * W + (dw - p)
        tap_info.append((off, not (dh == p and dw == p)))
        ok = ((h_idx + dh - p >= 0) & (h_idx + dh - p < H)
              & (w_idx + dw - p >= 0) & (w_idx + dw - p < W))
        mask_rows.append(ok.astype(np.float32))
    for _ in range(T_pad - T):
        tap_info.append(None)
        mask_rows.append(np.zeros(l_out, np.float32))
    tap_info = tuple(tap_info)
    masks = jnp.asarray(np.stack(mask_rows, axis=0)).astype(compute_dtype)

    # No jnp.pad pass over the volume: the kernel fetches / zero-fills the D
    # halo itself.  (The astype is a no-op on the f32 path.)
    x_flat = x_ncdhw.reshape(N, Cin, D * HW).astype(compute_dtype)

    lane_hint = math.gcd(d_tile * HW, p * HW) if p > 0 else d_tile * HW

    kern = functools.partial(
        _crosshair_kernel, tap_info=tap_info, group=group, cin=Cin,
        d_tile=d_tile, n_d_tiles=n_d_tiles, pad=p, hw=HW,
        l_out=l_out, lp=lp, lane_hint=lane_hint)

    flops = 2 * N * D * HW * T * Cin * Cout
    bytes_accessed = int(
        x_flat.size * in_item
        + 2 * p * HW * Cin * in_item * N * max(n_d_tiles - 1, 0)   # halo re-reads
        + wf.size * in_item + masks.size * in_item + Cout * 8
        + N * Cout * D * HW * out_item)

    out = pl.pallas_call(
        kern,
        out_shape=jax.ShapeDtypeStruct((N, Cout, D * HW), out_dtype),
        grid=(N, n_d_tiles),
        in_specs=[
            pl.BlockSpec(memory_space=pl.ANY),                        # x: manual halo DMA
            pl.BlockSpec((Cout, T_pad * Cin), lambda n, t: (0, 0)),   # fused weights
            pl.BlockSpec((Cout, 1), lambda n, t: (0, 0)),             # bias
            pl.BlockSpec((T_pad, l_out), lambda n, t: (0, 0)),        # tap masks
        ],
        out_specs=pl.BlockSpec((1, Cout, l_out), lambda n, t: (n, 0, t)),
        scratch_shapes=[
            pltpu.VMEM((2, Cin, lp), compute_dtype),                  # double-buffered input
            pltpu.SemaphoreType.DMA((2,)),
            pltpu.VMEM((T_pad * Cin, l_out), compute_dtype),          # activation slab
        ],
        compiler_params=pltpu.CompilerParams(
            dimension_semantics=("parallel", "arbitrary"),
            vmem_limit_bytes=budget),
        cost_estimate=pl.CostEstimate(flops=flops, transcendentals=0,
                                      bytes_accessed=bytes_accessed),
    )(x_flat, wf, b_total, masks)

    return out.reshape(N, Cout, D, H, W)


def _reference(x_ncdhw, wx, wy, wz, bx, by, bz):
    dn = jax.lax.conv_dimension_numbers(x_ncdhw.shape, wx.shape,
                                        ("NCDHW", "OIDHW", "NCDHW"))

    def one(w, b):
        o = jax.lax.conv_general_dilated(x_ncdhw, w, (1, 1, 1), "SAME",
                                         dimension_numbers=dn)
        return o + b[None, :, None, None, None]

    return one(wx, bx) + one(wy, by) + one(wz, bz)


if __name__ == "__main__":
    # Shapes consistent with the module: batch=2, Cin=4, Cout=8, spatial 16^3,
    # kernel_size=3, stride=1 (required by padding='same').
    N, Cin, Cout, D, H, W, K = 2, 4, 8, 16, 16, 16, 3

    key = jax.random.PRNGKey(0)
    kx, kwx, kwy, kwz, kbx, kby, kbz = jax.random.split(key, 7)

    x = jax.random.normal(kx, (N, Cin, D, H, W), dtype=jnp.float32)
    wx = 0.1 * jax.random.normal(kwx, (Cout, Cin, K, 1, K), dtype=jnp.float32)
    wy = 0.1 * jax.random.normal(kwy, (Cout, Cin, K, K, 1), dtype=jnp.float32)
    wz = 0.1 * jax.random.normal(kwz, (Cout, Cin, 1, K, K), dtype=jnp.float32)
    bx = 0.1 * jax.random.normal(kbx, (Cout,), dtype=jnp.float32)
    by = 0.1 * jax.random.normal(kby, (Cout,), dtype=jnp.float32)
    bz = 0.1 * jax.random.normal(kbz, (Cout,), dtype=jnp.float32)

    ref = _reference(x, wx, wy, wz, bx, by, bz)

    # 1) f32, 4 D-tiles: exercises first / interior / last halo-DMA kinds and
    #    the double-buffered pipeline.
    out = conv3d_ch(x, wx, wy, wz, bx, by, bz, kernel_size=K, d_tile=4)
    out = jax.block_until_ready(out)
    np.testing.assert_allclose(np.asarray(out), np.asarray(ref),
                               rtol=2e-4, atol=2e-4)

    # 2) f32, auto-tiled: exercises the VMEM-aware tile picker (single-tile path).
    out = conv3d_ch(x, wx, wy, wz, bx, by, bz, kernel_size=K)
    out = jax.block_until_ready(out)
    np.testing.assert_allclose(np.asarray(out), np.asarray(ref),
                               rtol=2e-4, atol=2e-4)

    # 3) bf16 activations/weights/slab with f32 accumulation (plumbing check).
    out = conv3d_ch(x, wx, wy, wz, bx, by, bz, kernel_size=K,
                    d_tile=8, compute_dtype=jnp.bfloat16)
    out = jax.block_until_ready(out)
    np.testing.assert_allclose(np.asarray(out), np.asarray(ref),
                               rtol=5e-2, atol=1e-1)

    print("KERNEL_OK")
</pallas_src>

<mosaic_0001>
module attributes {stable_mosaic.version = 11 : i64} {
  func.func @_crosshair_kernel(%arg0: i32, %arg1: i32, %arg2: memref<2x4x4096xf32, #tpu.memory_space<any>>, %arg3: memref<8x80xf32, #tpu.memory_space<vmem>>, %arg4: memref<8x1xf32, #tpu.memory_space<vmem>>, %arg5: memref<20x1024xf32, #tpu.memory_space<vmem>>, %arg6: memref<1x8x1024xf32, #tpu.memory_space<vmem>>, %arg7: memref<2x4x1536xf32, #tpu.memory_space<vmem>>, %arg8: memref<2x!tpu.dma_semaphore, #tpu.memory_space<semaphore_mem>>, %arg9: memref<80x1024xf32, #tpu.memory_space<vmem>>) attributes {dimension_semantics = [#tpu.dimension_semantics<parallel>, #tpu.dimension_semantics<arbitrary>], iteration_bounds = array<i64: 2, 4>, scalar_prefetch = 0 : i64, scratch_operands = 3 : i64, tpu.core_type = #tpu.core_type<tc>, window_params = [{}, {pipeline_mode = #tpu.pipeline_mode<synchronous>, transform_indices = @transform_1, window_bounds = array<i64: 8, 80>}, {pipeline_mode = #tpu.pipeline_mode<synchronous>, transform_indices = @transform_2, window_bounds = array<i64: 8, 1>}, {pipeline_mode = #tpu.pipeline_mode<synchronous>, transform_indices = @transform_3, window_bounds = array<i64: 20, 1024>}, {transform_indices = @transform_4, window_bounds = array<i64: 1, 8, 1024>}]} {
    %c2_i32 = arith.constant 2 : i32
    %c0_i32 = arith.constant 0 : i32
    %0 = arith.cmpi eq, %c2_i32, %c0_i32 : i32
    %c1_i32 = arith.constant 1 : i32
    %1 = arith.select %0, %c1_i32, %c2_i32 : i32
    %2 = arith.remsi %arg1, %1 : i32
    %c0_i32_0 = arith.constant 0 : i32
    %3 = arith.cmpi ne, %2, %c0_i32_0 : i32
    %c0_i32_1 = arith.constant 0 : i32
    %4 = arith.cmpi slt, %2, %c0_i32_1 : i32
    %c0_i32_2 = arith.constant 0 : i32
    %5 = arith.cmpi slt, %1, %c0_i32_2 : i32
    %6 = arith.xori %4, %5 : i1
    %7 = arith.andi %6, %3 : i1
    %8 = arith.addi %2, %1 : i32
    %9 = arith.select %7, %8, %2 : i32
    %c0_i32_3 = arith.constant 0 : i32
    %10 = arith.cmpi eq, %arg1, %c0_i32_3 : i32
    %11 = arith.extui %10 : i1 to i32
    %c0_i32_4 = arith.constant 0 : i32
    %12 = arith.cmpi ne, %11, %c0_i32_4 : i32
    scf.if %12 {
      %c0_i32_62 = arith.constant 0 : i32
      %c0_i32_63 = arith.constant 0 : i32
      %c0_i32_64 = arith.constant 0 : i32
      %c0_i32_65 = arith.constant 0 : i32
      %142 = tpu.memref_slice %arg2[%arg0, %c0_i32_64, %c0_i32_65] : memref<2x4x4096xf32, #tpu.memory_space<any>> -> memref<1x4x1280xf32, #tpu.memory_space<any>>
      %143 = tpu.memref_squeeze %142 : memref<1x4x1280xf32, #tpu.memory_space<any>> -> memref<4x1280xf32, #tpu.memory_space<any>>
      %c0_i32_66 = arith.constant 0 : i32
      %c256_i32 = arith.constant 256 : i32
      %144 = tpu.memref_slice %arg7[%c0_i32_62, %c0_i32_66, %c256_i32] : memref<2x4x1536xf32, #tpu.memory_space<vmem>> -> memref<1x4x1280xf32, #tpu.memory_space<vmem>>
      %145 = tpu.memref_squeeze %144 : memref<1x4x1280xf32, #tpu.memory_space<vmem>> -> memref<4x1280xf32, #tpu.memory_space<vmem>>
      %146 = tpu.memref_slice %arg8[%c0_i32_63] : memref<2x!tpu.dma_semaphore, #tpu.memory_space<semaphore_mem>> -> memref<1x!tpu.dma_semaphore, #tpu.memory_space<semaphore_mem>>
      %147 = tpu.memref_squeeze %146 : memref<1x!tpu.dma_semaphore, #tpu.memory_space<semaphore_mem>> -> memref<!tpu.dma_semaphore, #tpu.memory_space<semaphore_mem>>
      tpu.enqueue_dma source(%143 : memref<4x1280xf32, #tpu.memory_space<any>>) target(%145 : memref<4x1280xf32, #tpu.memory_space<vmem>>) target_semaphore(%147 : memref<!tpu.dma_semaphore, #tpu.memory_space<semaphore_mem>>)
    } else {
    }
    %c1_i32_5 = arith.constant 1 : i32
    %13 = arith.addi %arg1, %c1_i32_5 : i32
    %c3_i32 = arith.constant 3 : i32
    %14 = arith.cmpi slt, %13, %c3_i32 : i32
    %15 = arith.extui %14 : i1 to i32
    %c0_i32_6 = arith.constant 0 : i32
    %16 = arith.cmpi ne, %15, %c0_i32_6 : i32
    scf.if %16 {
      %c1_i32_62 = arith.constant 1 : i32
      %142 = arith.addi %arg1, %c1_i32_62 : i32
      %c1_i32_63 = arith.constant 1 : i32
      %143 = arith.subi %c1_i32_63, %9 : i32
      %c4_i32 = arith.constant 4 : i32
      %144 = arith.muli %142, %c4_i32 : i32
      %c1_i32_64 = arith.constant 1 : i32
      %145 = arith.subi %144, %c1_i32_64 : i32
      %c256_i32 = arith.constant 256 : i32
      %146 = arith.muli %145, %c256_i32 : i32
      %147 = tpu.assume_multiple %146, 256 : i32
      %c0_i32_65 = arith.constant 0 : i32
      %148 = tpu.memref_slice %arg2[%arg0, %c0_i32_65, %147] : memref<2x4x4096xf32, #tpu.memory_space<any>> -> memref<1x4x1536xf32, #tpu.memory_space<any>>
      %149 = tpu.memref_squeeze %148 : memref<1x4x1536xf32, #tpu.memory_space<any>> -> memref<4x1536xf32, #tpu.memory_space<any>>
      %c0_i32_66 = arith.constant 0 : i32
      %c0_i32_67 = arith.constant 0 : i32
      %150 = tpu.memref_slice %arg7[%143, %c0_i32_66, %c0_i32_67] : memref<2x4x1536xf32, #tpu.memory_space<vmem>> -> memref<1x4x1536xf32, #tpu.memory_space<vmem>>
      %151 = tpu.memref_squeeze %150 : memref<1x4x1536xf32, #tpu.memory_space<vmem>> -> memref<4x1536xf32, #tpu.memory_space<vmem>>
      %152 = tpu.memref_slice %arg8[%143] : memref<2x!tpu.dma_semaphore, #tpu.memory_space<semaphore_mem>> -> memref<1x!tpu.dma_semaphore, #tpu.memory_space<semaphore_mem>>
      %153 = tpu.memref_squeeze %152 : memref<1x!tpu.dma_semaphore, #tpu.memory_space<semaphore_mem>> -> memref<!tpu.dma_semaphore, #tpu.memory_space<semaphore_mem>>
      tpu.enqueue_dma source(%149 : memref<4x1536xf32, #tpu.memory_space<any>>) target(%151 : memref<4x1536xf32, #tpu.memory_space<vmem>>) target_semaphore(%153 : memref<!tpu.dma_semaphore, #tpu.memory_space<semaphore_mem>>)
    } else {
    }
    %c1_i32_7 = arith.constant 1 : i32
    %17 = arith.addi %arg1, %c1_i32_7 : i32
    %c3_i32_8 = arith.constant 3 : i32
    %18 = arith.cmpi eq, %17, %c3_i32_8 : i32
    %19 = arith.extui %18 : i1 to i32
    %c0_i32_9 = arith.constant 0 : i32
    %20 = arith.cmpi ne, %19, %c0_i32_9 : i32
    scf.if %20 {
      %c1_i32_62 = arith.constant 1 : i32
      %142 = arith.addi %arg1, %c1_i32_62 : i32
      %c1_i32_63 = arith.constant 1 : i32
      %143 = arith.subi %c1_i32_63, %9 : i32
      %c4_i32 = arith.constant 4 : i32
      %144 = arith.muli %142, %c4_i32 : i32
      %c1_i32_64 = arith.constant 1 : i32
      %145 = arith.subi %144, %c1_i32_64 : i32
      %c256_i32 = arith.constant 256 : i32
      %146 = arith.muli %145, %c256_i32 : i32
      %147 = tpu.assume_multiple %146, 256 : i32
      %c0_i32_65 = arith.constant 0 : i32
      %148 = tpu.memref_slice %arg2[%arg0, %c0_i32_65, %147] : memref<2x4x4096xf32, #tpu.memory_space<any>> -> memref<1x4x1280xf32, #tpu.memory_space<any>>
      %149 = tpu.memref_squeeze %148 : memref<1x4x1280xf32, #tpu.memory_space<any>> -> memref<4x1280xf32, #tpu.memory_space<any>>
      %c0_i32_66 = arith.constant 0 : i32
      %c0_i32_67 = arith.constant 0 : i32
      %150 = tpu.memref_slice %arg7[%143, %c0_i32_66, %c0_i32_67] : memref<2x4x1536xf32, #tpu.memory_space<vmem>> -> memref<1x4x1280xf32, #tpu.memory_space<vmem>>
      %151 = tpu.memref_squeeze %150 : memref<1x4x1280xf32, #tpu.memory_space<vmem>> -> memref<4x1280xf32, #tpu.memory_space<vmem>>
      %152 = tpu.memref_slice %arg8[%143] : memref<2x!tpu.dma_semaphore, #tpu.memory_space<semaphore_mem>> -> memref<1x!tpu.dma_semaphore, #tpu.memory_space<semaphore_mem>>
      %153 = tpu.memref_squeeze %152 : memref<1x!tpu.dma_semaphore, #tpu.memory_space<semaphore_mem>> -> memref<!tpu.dma_semaphore, #tpu.memory_space<semaphore_mem>>
      tpu.enqueue_dma source(%149 : memref<4x1280xf32, #tpu.memory_space<any>>) target(%151 : memref<4x1280xf32, #tpu.memory_space<vmem>>) target_semaphore(%153 : memref<!tpu.dma_semaphore, #tpu.memory_space<semaphore_mem>>)
    } else {
    }
    %c0_i32_10 = arith.constant 0 : i32
    %21 = arith.cmpi eq, %arg1, %c0_i32_10 : i32
    %22 = arith.extui %21 : i1 to i32
    %c0_i32_11 = arith.constant 0 : i32
    %23 = arith.cmpi ne, %22, %c0_i32_11 : i32
    scf.if %23 {
      %c0_i32_62 = arith.constant 0 : i32
      %c0_i32_63 = arith.constant 0 : i32
      %142 = tpu.memref_slice %arg2[%arg0, %c0_i32_62, %c0_i32_63] : memref<2x4x4096xf32, #tpu.memory_space<any>> -> memref<1x4x1280xf32, #tpu.memory_space<any>>
      %143 = tpu.memref_squeeze %142 : memref<1x4x1280xf32, #tpu.memory_space<any>> -> memref<4x1280xf32, #tpu.memory_space<any>>
      %c0_i32_64 = arith.constant 0 : i32
      %c256_i32 = arith.constant 256 : i32
      %144 = tpu.memref_slice %arg7[%9, %c0_i32_64, %c256_i32] : memref<2x4x1536xf32, #tpu.memory_space<vmem>> -> memref<1x4x1280xf32, #tpu.memory_space<vmem>>
      %145 = tpu.memref_squeeze %144 : memref<1x4x1280xf32, #tpu.memory_space<vmem>> -> memref<4x1280xf32, #tpu.memory_space<vmem>>
      %146 = tpu.memref_slice %arg8[%9] : memref<2x!tpu.dma_semaphore, #tpu.memory_space<semaphore_mem>> -> memref<1x!tpu.dma_semaphore, #tpu.memory_space<semaphore_mem>>
      %147 = tpu.memref_squeeze %146 : memref<1x!tpu.dma_semaphore, #tpu.memory_space<semaphore_mem>> -> memref<!tpu.dma_semaphore, #tpu.memory_space<semaphore_mem>>
      tpu.wait_dma2 semaphore(%147 : memref<!tpu.dma_semaphore, #tpu.memory_space<semaphore_mem>>) src(%143 : memref<4x1280xf32, #tpu.memory_space<any>>) dst(%145 : memref<4x1280xf32, #tpu.memory_space<vmem>>)
    } else {
    }
    %c3_i32_12 = arith.constant 3 : i32
    %24 = arith.cmpi eq, %arg1, %c3_i32_12 : i32
    %25 = arith.extui %24 : i1 to i32
    %c0_i32_13 = arith.constant 0 : i32
    %26 = arith.cmpi ne, %25, %c0_i32_13 : i32
    scf.if %26 {
      %c4_i32 = arith.constant 4 : i32
      %142 = arith.muli %arg1, %c4_i32 : i32
      %c1_i32_62 = arith.constant 1 : i32
      %143 = arith.subi %142, %c1_i32_62 : i32
      %c256_i32 = arith.constant 256 : i32
      %144 = arith.muli %143, %c256_i32 : i32
      %145 = tpu.assume_multiple %144, 256 : i32
      %c0_i32_63 = arith.constant 0 : i32
      %146 = tpu.memref_slice %arg2[%arg0, %c0_i32_63, %145] : memref<2x4x4096xf32, #tpu.memory_space<any>> -> memref<1x4x1280xf32, #tpu.memory_space<any>>
      %147 = tpu.memref_squeeze %146 : memref<1x4x1280xf32, #tpu.memory_space<any>> -> memref<4x1280xf32, #tpu.memory_space<any>>
      %c0_i32_64 = arith.constant 0 : i32
      %c0_i32_65 = arith.constant 0 : i32
      %148 = tpu.memref_slice %arg7[%9, %c0_i32_64, %c0_i32_65] : memref<2x4x1536xf32, #tpu.memory_space<vmem>> -> memref<1x4x1280xf32, #tpu.memory_space<vmem>>
      %149 = tpu.memref_squeeze %148 : memref<1x4x1280xf32, #tpu.memory_space<vmem>> -> memref<4x1280xf32, #tpu.memory_space<vmem>>
      %150 = tpu.memref_slice %arg8[%9] : memref<2x!tpu.dma_semaphore, #tpu.memory_space<semaphore_mem>> -> memref<1x!tpu.dma_semaphore, #tpu.memory_space<semaphore_mem>>
      %151 = tpu.memref_squeeze %150 : memref<1x!tpu.dma_semaphore, #tpu.memory_space<semaphore_mem>> -> memref<!tpu.dma_semaphore, #tpu.memory_space<semaphore_mem>>
      tpu.wait_dma2 semaphore(%151 : memref<!tpu.dma_semaphore, #tpu.memory_space<semaphore_mem>>) src(%147 : memref<4x1280xf32, #tpu.memory_space<any>>) dst(%149 : memref<4x1280xf32, #tpu.memory_space<vmem>>)
    } else {
    }
    %c0_i32_14 = arith.constant 0 : i32
    %27 = arith.cmpi sgt, %arg1, %c0_i32_14 : i32
    %c3_i32_15 = arith.constant 3 : i32
    %28 = arith.cmpi slt, %arg1, %c3_i32_15 : i32
    %29 = arith.andi %27, %28 : i1
    %30 = arith.extui %29 : i1 to i32
    %c0_i32_16 = arith.constant 0 : i32
    %31 = arith.cmpi ne, %30, %c0_i32_16 : i32
    scf.if %31 {
      %c4_i32 = arith.constant 4 : i32
      %142 = arith.muli %arg1, %c4_i32 : i32
      %c1_i32_62 = arith.constant 1 : i32
      %143 = arith.subi %142, %c1_i32_62 : i32
      %c256_i32 = arith.constant 256 : i32
      %144 = arith.muli %143, %c256_i32 : i32
      %145 = tpu.assume_multiple %144, 256 : i32
      %c0_i32_63 = arith.constant 0 : i32
      %146 = tpu.memref_slice %arg2[%arg0, %c0_i32_63, %145] : memref<2x4x4096xf32, #tpu.memory_space<any>> -> memref<1x4x1536xf32, #tpu.memory_space<any>>
      %147 = tpu.memref_squeeze %146 : memref<1x4x1536xf32, #tpu.memory_space<any>> -> memref<4x1536xf32, #tpu.memory_space<any>>
      %c0_i32_64 = arith.constant 0 : i32
      %c0_i32_65 = arith.constant 0 : i32
      %148 = tpu.memref_slice %arg7[%9, %c0_i32_64, %c0_i32_65] : memref<2x4x1536xf32, #tpu.memory_space<vmem>> -> memref<1x4x1536xf32, #tpu.memory_space<vmem>>
      %149 = tpu.memref_squeeze %148 : memref<1x4x1536xf32, #tpu.memory_space<vmem>> -> memref<4x1536xf32, #tpu.memory_space<vmem>>
      %150 = tpu.memref_slice %arg8[%9] : memref<2x!tpu.dma_semaphore, #tpu.memory_space<semaphore_mem>> -> memref<1x!tpu.dma_semaphore, #tpu.memory_space<semaphore_mem>>
      %151 = tpu.memref_squeeze %150 : memref<1x!tpu.dma_semaphore, #tpu.memory_space<semaphore_mem>> -> memref<!tpu.dma_semaphore, #tpu.memory_space<semaphore_mem>>
      tpu.wait_dma2 semaphore(%151 : memref<!tpu.dma_semaphore, #tpu.memory_space<semaphore_mem>>) src(%147 : memref<4x1536xf32, #tpu.memory_space<any>>) dst(%149 : memref<4x1536xf32, #tpu.memory_space<vmem>>)
    } else {
    }
    %c0_i32_17 = arith.constant 0 : i32
    %32 = arith.cmpi eq, %arg1, %c0_i32_17 : i32
    %33 = arith.extui %32 : i1 to i32
    %c0_i32_18 = arith.constant 0 : i32
    %34 = arith.cmpi ne, %33, %c0_i32_18 : i32
    scf.if %34 {
      %cst_62 = arith.constant 0.000000e+00 : f32
      %142 = vector.broadcast %cst_62 : f32 to vector<4x256xf32>
      %c0_63 = arith.constant 0 : index
      %c0_64 = arith.constant 0 : index
      %c0_65 = arith.constant 0 : index
      %143 = vector.load %arg7[%c0_63, %c0_64, %c0_65] : memref<2x4x1536xf32, #tpu.memory_space<vmem>>, vector<1x4x256xf32>
      %144 = vector.shape_cast %143 : vector<1x4x256xf32> to vector<4x256xf32>
      %145 = vector.shape_cast %142 : vector<4x256xf32> to vector<1x4x256xf32>
      tpu.vector_store %arg7[%c0_63, %c0_64, %c0_65], %145 {strides = array<i32>} : memref<2x4x1536xf32, #tpu.memory_space<vmem>>, vector<1x4x256xf32>,
    } else {
    }
    %c3_i32_19 = arith.constant 3 : i32
    %35 = arith.cmpi eq, %arg1, %c3_i32_19 : i32
    %36 = arith.extui %35 : i1 to i32
    %c0_i32_20 = arith.constant 0 : i32
    %37 = arith.cmpi ne, %36, %c0_i32_20 : i32
    scf.if %37 {
      %cst_62 = arith.constant 0.000000e+00 : f32
      %142 = vector.broadcast %cst_62 : f32 to vector<4x256xf32>
      %c1_63 = arith.constant 1 : index
      %c0_64 = arith.constant 0 : index
      %c1280 = arith.constant 1280 : index
      %143 = vector.load %arg7[%c1_63, %c0_64, %c1280] : memref<2x4x1536xf32, #tpu.memory_space<vmem>>, vector<1x4x256xf32>
      %144 = vector.shape_cast %143 : vector<1x4x256xf32> to vector<4x256xf32>
      %145 = vector.shape_cast %142 : vector<4x256xf32> to vector<1x4x256xf32>
      tpu.vector_store %arg7[%c1_63, %c0_64, %c1280], %145 {strides = array<i32>} : memref<2x4x1536xf32, #tpu.memory_space<vmem>>, vector<1x4x256xf32>,
    } else {
    }
    %38 = arith.index_cast %9 : i32 to index
    %c0 = arith.constant 0 : index
    %c0_21 = arith.constant 0 : index
    %39 = vector.load %arg7[%38, %c0, %c0_21] : memref<2x4x1536xf32, #tpu.memory_space<vmem>>, vector<1x4x1536xf32>
    %40 = vector.shape_cast %39 : vector<1x4x1536xf32> to vector<4x1536xf32>
    %c16_i32 = arith.constant 16 : i32
    %41 = tpu.dynamic_rotate %40 by %c16_i32 dim 1 : vector<4x1536xf32>, i32 -> vector<4x1536xf32>
    %42 = vector.extract_strided_slice %41 {offsets = [0, 0], sizes = [4, 1024], strides = [1, 1]} : vector<4x1536xf32> to vector<4x1024xf32>
    %c0_22 = arith.constant 0 : index
    %c0_23 = arith.constant 0 : index
    %43 = vector.load %arg5[%c0_22, %c0_23] : memref<20x1024xf32, #tpu.memory_space<vmem>>, vector<1x1024xf32>
    %44 = vector.broadcast %43 : vector<1x1024xf32> to vector<4x1024xf32>
    %45 = arith.mulf %42, %44 : vector<4x1024xf32>
    %c1_i32_24 = arith.constant 1 : i32
    %46 = tpu.dynamic_rotate %40 by %c1_i32_24 dim 1 : vector<4x1536xf32>, i32 -> vector<4x1536xf32>
    %47 = vector.extract_strided_slice %46 {offsets = [0, 0], sizes = [4, 1024], strides = [1, 1]} : vector<4x1536xf32> to vector<4x1024xf32>
    %c1 = arith.constant 1 : index
    %c0_25 = arith.constant 0 : index
    %48 = vector.load %arg5[%c1, %c0_25] : memref<20x1024xf32, #tpu.memory_space<vmem>>, vector<1x1024xf32>
    %49 = vector.broadcast %48 : vector<1x1024xf32> to vector<4x1024xf32>
    %50 = arith.mulf %47, %49 : vector<4x1024xf32>
    %51 = tpu.concatenate %45, %50 in 0 : vector<4x1024xf32>, vector<4x1024xf32> -> vector<8x1024xf32>
    %c0_26 = arith.constant 0 : index
    %c0_27 = arith.constant 0 : index
    %52 = vector.load %arg9[%c0_26, %c0_27] : memref<80x1024xf32, #tpu.memory_space<vmem>>, vector<8x1024xf32>
    tpu.vector_store %arg9[%c0_26, %c0_27], %51 {strides = array<i32>} : memref<80x1024xf32, #tpu.memory_space<vmem>>, vector<8x1024xf32>,
    %53 = vector.extract_strided_slice %40 {offsets = [0, 0], sizes = [4, 1024], strides = [1, 1]} : vector<4x1536xf32> to vector<4x1024xf32>
    %54 = vector.extract_strided_slice %40 {offsets = [0, 1], sizes = [4, 1024], strides = [1, 1]} : vector<4x1536xf32> to vector<4x1024xf32>
    %c3 = arith.constant 3 : index
    %c0_28 = arith.constant 0 : index
    %55 = vector.load %arg5[%c3, %c0_28] : memref<20x1024xf32, #tpu.memory_space<vmem>>, vector<1x1024xf32>
    %56 = vector.broadcast %55 : vector<1x1024xf32> to vector<4x1024xf32>
    %57 = arith.mulf %54, %56 : vector<4x1024xf32>
    %58 = tpu.concatenate %53, %57 in 0 : vector<4x1024xf32>, vector<4x1024xf32> -> vector<8x1024xf32>
    %c8 = arith.constant 8 : index
    %c0_29 = arith.constant 0 : index
    %59 = vector.load %arg9[%c8, %c0_29] : memref<80x1024xf32, #tpu.memory_space<vmem>>, vector<8x1024xf32>
    tpu.vector_store %arg9[%c8, %c0_29], %58 {strides = array<i32>} : memref<80x1024xf32, #tpu.memory_space<vmem>>, vector<8x1024xf32>,
    %60 = vector.extract_strided_slice %40 {offsets = [0, 16], sizes = [4, 1024], strides = [1, 1]} : vector<4x1536xf32> to vector<4x1024xf32>
    %c4 = arith.constant 4 : index
    %c0_30 = arith.constant 0 : index
    %61 = vector.load %arg5[%c4, %c0_30] : memref<20x1024xf32, #tpu.memory_space<vmem>>, vector<1x1024xf32>
    %62 = vector.broadcast %61 : vector<1x1024xf32> to vector<4x1024xf32>
    %63 = arith.mulf %60, %62 : vector<4x1024xf32>
    %64 = vector.extract_strided_slice %40 {offsets = [0, 239], sizes = [4, 1024], strides = [1, 1]} : vector<4x1536xf32> to vector<4x1024xf32>
    %c5 = arith.constant 5 : index
    %c0_31 = arith.constant 0 : index
    %65 = vector.load %arg5[%c5, %c0_31] : memref<20x1024xf32, #tpu.memory_space<vmem>>, vector<1x1024xf32>
    %66 = vector.broadcast %65 : vector<1x1024xf32> to vector<4x1024xf32>
    %67 = arith.mulf %64, %66 : vector<4x1024xf32>
    %68 = tpu.concatenate %63, %67 in 0 : vector<4x1024xf32>, vector<4x1024xf32> -> vector<8x1024xf32>
    %c16 = arith.constant 16 : index
    %c0_32 = arith.constant 0 : index
    %69 = vector.load %arg9[%c16, %c0_32] : memref<80x1024xf32, #tpu.memory_space<vmem>>, vector<8x1024xf32>
    tpu.vector_store %arg9[%c16, %c0_32], %68 {strides = array<i32>} : memref<80x1024xf32, #tpu.memory_space<vmem>>, vector<8x1024xf32>,
    %70 = vector.extract_strided_slice %40 {offsets = [0, 240], sizes = [4, 1024], strides = [1, 1]} : vector<4x1536xf32> to vector<4x1024xf32>
    %c6 = arith.constant 6 : index
    %c0_33 = arith.constant 0 : index
    %71 = vector.load %arg5[%c6, %c0_33] : memref<20x1024xf32, #tpu.memory_space<vmem>>, vector<1x1024xf32>
    %72 = vector.broadcast %71 : vector<1x1024xf32> to vector<4x1024xf32>
    %73 = arith.mulf %70, %72 : vector<4x1024xf32>
    %74 = vector.extract_strided_slice %40 {offsets = [0, 241], sizes = [4, 1024], strides = [1, 1]} : vector<4x1536xf32> to vector<4x1024xf32>
    %c7 = arith.constant 7 : index
    %c0_34 = arith.constant 0 : index
    %75 = vector.load %arg5[%c7, %c0_34] : memref<20x1024xf32, #tpu.memory_space<vmem>>, vector<1x1024xf32>
    %76 = vector.broadcast %75 : vector<1x1024xf32> to vector<4x1024xf32>
    %77 = arith.mulf %74, %76 : vector<4x1024xf32>
    %78 = tpu.concatenate %73, %77 in 0 : vector<4x1024xf32>, vector<4x1024xf32> -> vector<8x1024xf32>
    %c24 = arith.constant 24 : index
    %c0_35 = arith.constant 0 : index
    %79 = vector.load %arg9[%c24, %c0_35] : memref<80x1024xf32, #tpu.memory_space<vmem>>, vector<8x1024xf32>
    tpu.vector_store %arg9[%c24, %c0_35], %78 {strides = array<i32>} : memref<80x1024xf32, #tpu.memory_space<vmem>>, vector<8x1024xf32>,
    %80 = vector.extract_strided_slice %40 {offsets = [0, 255], sizes = [4, 1024], strides = [1, 1]} : vector<4x1536xf32> to vector<4x1024xf32>
    %c8_36 = arith.constant 8 : index
    %c0_37 = arith.constant 0 : index
    %81 = vector.load %arg5[%c8_36, %c0_37] : memref<20x1024xf32, #tpu.memory_space<vmem>>, vector<1x1024xf32>
    %82 = vector.broadcast %81 : vector<1x1024xf32> to vector<4x1024xf32>
    %83 = arith.mulf %80, %82 : vector<4x1024xf32>
    %84 = vector.extract_strided_slice %40 {offsets = [0, 256], sizes = [4, 1024], strides = [1, 1]} : vector<4x1536xf32> to vector<4x1024xf32>
    %85 = tpu.concatenate %83, %84 in 0 : vector<4x1024xf32>, vector<4x1024xf32> -> vector<8x1024xf32>
    %c32 = arith.constant 32 : index
    %c0_38 = arith.constant 0 : index
    %86 = vector.load %arg9[%c32, %c0_38] : memref<80x1024xf32, #tpu.memory_space<vmem>>, vector<8x1024xf32>
    tpu.vector_store %arg9[%c32, %c0_38], %85 {strides = array<i32>} : memref<80x1024xf32, #tpu.memory_space<vmem>>, vector<8x1024xf32>,
    %87 = vector.extract_strided_slice %40 {offsets = [0, 257], sizes = [4, 1024], strides = [1, 1]} : vector<4x1536xf32> to vector<4x1024xf32>
    %c10 = arith.constant 10 : index
    %c0_39 = arith.constant 0 : index
    %88 = vector.load %arg5[%c10, %c0_39] : memref<20x1024xf32, #tpu.memory_space<vmem>>, vector<1x1024xf32>
    %89 = vector.broadcast %88 : vector<1x1024xf32> to vector<4x1024xf32>
    %90 = arith.mulf %87, %89 : vector<4x1024xf32>
    %91 = vector.extract_strided_slice %40 {offsets = [0, 271], sizes = [4, 1024], strides = [1, 1]} : vector<4x1536xf32> to vector<4x1024xf32>
    %c11 = arith.constant 11 : index
    %c0_40 = arith.constant 0 : index
    %92 = vector.load %arg5[%c11, %c0_40] : memref<20x1024xf32, #tpu.memory_space<vmem>>, vector<1x1024xf32>
    %93 = vector.broadcast %92 : vector<1x1024xf32> to vector<4x1024xf32>
    %94 = arith.mulf %91, %93 : vector<4x1024xf32>
    %95 = tpu.concatenate %90, %94 in 0 : vector<4x1024xf32>, vector<4x1024xf32> -> vector<8x1024xf32>
    %c40 = arith.constant 40 : index
    %c0_41 = arith.constant 0 : index
    %96 = vector.load %arg9[%c40, %c0_41] : memref<80x1024xf32, #tpu.memory_space<vmem>>, vector<8x1024xf32>
    tpu.vector_store %arg9[%c40, %c0_41], %95 {strides = array<i32>} : memref<80x1024xf32, #tpu.memory_space<vmem>>, vector<8x1024xf32>,
    %97 = vector.extract_strided_slice %40 {offsets = [0, 272], sizes = [4, 1024], strides = [1, 1]} : vector<4x1536xf32> to vector<4x1024xf32>
    %c12 = arith.constant 12 : index
    %c0_42 = arith.constant 0 : index
    %98 = vector.load %arg5[%c12, %c0_42] : memref<20x1024xf32, #tpu.memory_space<vmem>>, vector<1x1024xf32>
    %99 = vector.broadcast %98 : vector<1x1024xf32> to vector<4x1024xf32>
    %100 = arith.mulf %97, %99 : vector<4x1024xf32>
    %101 = vector.extract_strided_slice %40 {offsets = [0, 273], sizes = [4, 1024], strides = [1, 1]} : vector<4x1536xf32> to vector<4x1024xf32>
    %c13 = arith.constant 13 : index
    %c0_43 = arith.constant 0 : index
    %102 = vector.load %arg5[%c13, %c0_43] : memref<20x1024xf32, #tpu.memory_space<vmem>>, vector<1x1024xf32>
    %103 = vector.broadcast %102 : vector<1x1024xf32> to vector<4x1024xf32>
    %104 = arith.mulf %101, %103 : vector<4x1024xf32>
    %105 = tpu.concatenate %100, %104 in 0 : vector<4x1024xf32>, vector<4x1024xf32> -> vector<8x1024xf32>
    %c48 = arith.constant 48 : index
    %c0_44 = arith.constant 0 : index
    %106 = vector.load %arg9[%c48, %c0_44] : memref<80x1024xf32, #tpu.memory_space<vmem>>, vector<8x1024xf32>
    tpu.vector_store %arg9[%c48, %c0_44], %105 {strides = array<i32>} : memref<80x1024xf32, #tpu.memory_space<vmem>>, vector<8x1024xf32>,
    %107 = vector.extract_strided_slice %40 {offsets = [0, 496], sizes = [4, 1024], strides = [1, 1]} : vector<4x1536xf32> to vector<4x1024xf32>
    %c14 = arith.constant 14 : index
    %c0_45 = arith.constant 0 : index
    %108 = vector.load %arg5[%c14, %c0_45] : memref<20x1024xf32, #tpu.memory_space<vmem>>, vector<1x1024xf32>
    %109 = vector.broadcast %108 : vector<1x1024xf32> to vector<4x1024xf32>
    %110 = arith.mulf %107, %109 : vector<4x1024xf32>
    %111 = vector.extract_strided_slice %40 {offsets = [0, 511], sizes = [4, 1024], strides = [1, 1]} : vector<4x1536xf32> to vector<4x1024xf32>
    %c15 = arith.constant 15 : index
    %c0_46 = arith.constant 0 : index
    %112 = vector.load %arg5[%c15, %c0_46] : memref<20x1024xf32, #tpu.memory_space<vmem>>, vector<1x1024xf32>
    %113 = vector.broadcast %112 : vector<1x1024xf32> to vector<4x1024xf32>
    %114 = arith.mulf %111, %113 : vector<4x1024xf32>
    %115 = tpu.concatenate %110, %114 in 0 : vector<4x1024xf32>, vector<4x1024xf32> -> vector<8x1024xf32>
    %c56 = arith.constant 56 : index
    %c0_47 = arith.constant 0 : index
    %116 = vector.load %arg9[%c56, %c0_47] : memref<80x1024xf32, #tpu.memory_space<vmem>>, vector<8x1024xf32>
    tpu.vector_store %arg9[%c56, %c0_47], %115 {strides = array<i32>} : memref<80x1024xf32, #tpu.memory_space<vmem>>, vector<8x1024xf32>,
    %117 = vector.extract_strided_slice %40 {offsets = [0, 512], sizes = [4, 1024], strides = [1, 1]} : vector<4x1536xf32> to vector<4x1024xf32>
    %c1023_i32 = arith.constant 1023 : i32
    %118 = tpu.dynamic_rotate %40 by %c1023_i32 dim 1 : vector<4x1536xf32>, i32 -> vector<4x1536xf32>
    %119 = vector.extract_strided_slice %118 {offsets = [0, 0], sizes = [4, 1024], strides = [1, 1]} : vector<4x1536xf32> to vector<4x1024xf32>
    %c17 = arith.constant 17 : index
    %c0_48 = arith.constant 0 : index
    %120 = vector.load %arg5[%c17, %c0_48] : memref<20x1024xf32, #tpu.memory_space<vmem>>, vector<1x1024xf32>
    %121 = vector.broadcast %120 : vector<1x1024xf32> to vector<4x1024xf32>
    %122 = arith.mulf %119, %121 : vector<4x1024xf32>
    %123 = tpu.concatenate %117, %122 in 0 : vector<4x1024xf32>, vector<4x1024xf32> -> vector<8x1024xf32>
    %c64 = arith.constant 64 : index
    %c0_49 = arith.constant 0 : index
    %124 = vector.load %arg9[%c64, %c0_49] : memref<80x1024xf32, #tpu.memory_space<vmem>>, vector<8x1024xf32>
    tpu.vector_store %arg9[%c64, %c0_49], %123 {strides = array<i32>} : memref<80x1024xf32, #tpu.memory_space<vmem>>, vector<8x1024xf32>,
    %c1008_i32 = arith.constant 1008 : i32
    %125 = tpu.dynamic_rotate %40 by %c1008_i32 dim 1 : vector<4x1536xf32>, i32 -> vector<4x1536xf32>
    %126 = vector.extract_strided_slice %125 {offsets = [0, 0], sizes = [4, 1024], strides = [1, 1]} : vector<4x1536xf32> to vector<4x1024xf32>
    %c18 = arith.constant 18 : index
    %c0_50 = arith.constant 0 : index
    %127 = vector.load %arg5[%c18, %c0_50] : memref<20x1024xf32, #tpu.memory_space<vmem>>, vector<1x1024xf32>
    %128 = vector.broadcast %127 : vector<1x1024xf32> to vector<4x1024xf32>
    %129 = arith.mulf %126, %128 : vector<4x1024xf32>
    %cst = arith.constant 0.000000e+00 : f32
    %130 = vector.broadcast %cst : f32 to vector<4x1024xf32>
    %131 = tpu.concatenate %129, %130 in 0 : vector<4x1024xf32>, vector<4x1024xf32> -> vector<8x1024xf32>
    %c72 = arith.constant 72 : index
    %c0_51 = arith.constant 0 : index
    %132 = vector.load %arg9[%c72, %c0_51] : memref<80x1024xf32, #tpu.memory_space<vmem>>, vector<8x1024xf32>
    tpu.vector_store %arg9[%c72, %c0_51], %131 {strides = array<i32>} : memref<80x1024xf32, #tpu.memory_space<vmem>>, vector<8x1024xf32>,
    %c0_52 = arith.constant 0 : index
    %c0_53 = arith.constant 0 : index
    %133 = vector.load %arg3[%c0_52, %c0_53] : memref<8x80xf32, #tpu.memory_space<vmem>>, vector<8x80xf32>
    %c0_54 = arith.constant 0 : index
    %c0_55 = arith.constant 0 : index
    %134 = vector.load %arg9[%c0_54, %c0_55] : memref<80x1024xf32, #tpu.memory_space<vmem>>, vector<80x1024xf32>
    %cst_56 = arith.constant dense<0.000000e+00> : vector<8x1024xf32>
    %135 = tpu.matmul %133, %134, %cst_56 {dimension_numbers = #tpu.dot_dimension_numbers<[1], [0], [0], [1], [0, 0, 1, 1], [], []>} : vector<8x80xf32>, vector<80x1024xf32>, vector<8x1024xf32> -> vector<8x1024xf32>
    %c0_57 = arith.constant 0 : index
    %c0_58 = arith.constant 0 : index
    %136 = vector.load %arg4[%c0_57, %c0_58] : memref<8x1xf32, #tpu.memory_space<vmem>>, vector<8x1xf32>
    %137 = vector.broadcast %136 : vector<8x1xf32> to vector<8x1024xf32>
    %138 = arith.addf %135, %137 : vector<8x1024xf32>
    %c0_59 = arith.constant 0 : index
    %c0_60 = arith.constant 0 : index
    %c0_61 = arith.constant 0 : index
    %139 = vector.load %arg6[%c0_59, %c0_60, %c0_61] : memref<1x8x1024xf32, #tpu.memory_space<vmem>>, vector<1x8x1024xf32>
    %140 = vector.shape_cast %139 : vector<1x8x1024xf32> to vector<8x1024xf32>
    %141 = vector.shape_cast %138 : vector<8x1024xf32> to vector<1x8x1024xf32>
    tpu.vector_store %arg6[%c0_59, %c0_60, %c0_61], %141 {strides = array<i32>} : memref<1x8x1024xf32, #tpu.memory_space<vmem>>, vector<1x8x1024xf32>,
    return
  }
  func.func @transform_1(%arg0: i32, %arg1: i32) -> (i32, i32) {
    %c0_i32 = arith.constant 0 : i32
    %c0_i32_0 = arith.constant 0 : i32
    %c0_i32_1 = arith.constant 0 : i32
    return %c0_i32, %c0_i32_0 : i32, i32
  }
  func.func @transform_2(%arg0: i32, %arg1: i32) -> (i32, i32) {
    %c0_i32 = arith.constant 0 : i32
    %c0_i32_0 = arith.constant 0 : i32
    %c0_i32_1 = arith.constant 0 : i32
    return %c0_i32, %c0_i32_0 : i32, i32
  }
  func.func @transform_3(%arg0: i32, %arg1: i32) -> (i32, i32) {
    %c0_i32 = arith.constant 0 : i32
    %c0_i32_0 = arith.constant 0 : i32
    %c0_i32_1 = arith.constant 0 : i32
    return %c0_i32, %c0_i32_0 : i32, i32
  }
  func.func @transform_4(%arg0: i32, %arg1: i32) -> (i32, i32, i32) {
    %c0_i32 = arith.constant 0 : i32
    %c0_i32_0 = arith.constant 0 : i32
    return %arg0, %c0_i32, %arg1 : i32, i32, i32
  }
}

</mosaic_0001>

<llo_original>
// kernel: tpu_custom_call.1
$region0: #{tpu_custom_call.1}
  #allocation0 [shape = 'u32[]', space=smem, size = 0x4, offset = 0x4, fixed_abs, tag = 'smem constant byte address 0x4 - core index']
  #allocation1 [shape = 'u32[144,128]{1,0:T(1,128)}', space=vmem, size = 0x12000, scoped, tag = 'internal scratch']
  #allocation2 [shape = 'f32[2,4,1536]{2,1,0:T(4,128)}', space=vmem, size = 0xc000, scoped, tag = 'scratch operand']
  #allocation3 [shape = 's32[2]{0}', space=sflag, size = 0x8, scoped, tag = 'scratch operand']
  #allocation4 [shape = 'f32[80,1024]{1,0:T(8,128)}', space=vmem, size = 0x50000, scoped, tag = 'scratch operand']
  #allocation9 [shape = 's32[]', space=sflag, size = 0x4, offset = 0, fixed_abs, tag = 'sflag constant byte address 0x0 - dummy sync flag']
  #allocation10 [shape = 's32[]', space=sflag, size = 0x4, offset = 0, fixed_abs, tag = 'sflag constant byte address 0x0 - dummy sync flag']
  #allocation11 [shape = 'u32[]', space=smem, size = 0x4, offset = 0x44, fixed_abs, tag = 'smem constant byte address 0x44 - assertion arg 0']
  #allocation12 [shape = 'u32[]', space=smem, size = 0x4, offset = 0x48, fixed_abs, tag = 'smem constant byte address 0x48 - assertion arg 1']
  #allocation13 [shape = 's32[]', space=sflag, size = 0x4, offset = 0, fixed_abs, tag = 'sflag constant byte address 0x0 - dummy sync flag']
  #allocation14 [shape = 's32[]', space=sflag, size = 0x4, offset = 0, fixed_abs, tag = 'sflag constant byte address 0x0 - dummy sync flag']
  #allocation15 [shape = 's32[]', space=sflag, size = 0x4, offset = 0, fixed_abs, tag = 'sflag constant byte address 0x0 - dummy sync flag']
  #allocation16 [shape = 's32[]', space=sflag, size = 0x4, offset = 0, fixed_abs, tag = 'sflag constant byte address 0x0 - dummy sync flag']
  %s0 = inlined_call_operand.hbm [shape: f32[2,4,4096], index: 0, kind: input, shape index: {}]
  %s1 = inlined_call_operand.vmem [shape: f32[8,80], index: 1, kind: input, shape index: {}]
  %s2 = inlined_call_operand.vmem [shape: f32[8,1], index: 2, kind: input, shape index: {}]
  %s3 = inlined_call_operand.hbm [shape: f32[20,1024], index: 3, kind: input, shape index: {}]
  %s4 = inlined_call_operand.hbm [shape: f32[2,8,4096], index: 4, kind: output, shape index: {}]
  %s5 = sld [smem:[#allocation0]]
  $region93: #{tpu_custom_call.1} parent=0
    _
  %s7 = ssub.s32 1, %s5
  %s8 = scalar_select 0, %s7, %s5
  $region1: #{tpu_custom_call.1} parent=0
    #allocation5 [shape = 'u8[98304]{0}', space=vmem, size = 0x18000, scoped, tag = 'input window, operand 3, single buffered']
    #allocation6 [shape = 's32[2]{0}', space=sflag, size = 0x8, scoped, tag = 'scoped memory for tpu_custom_call.1']
    #allocation7 [shape = 's32[2]{0}', space=sflag, size = 0x8, scoped, tag = 'scoped memory for tpu_custom_call.1']
    #allocation8 [shape = 'u8[65536]{0}', space=vmem, size = 0x10000, scoped, tag = 'output window, operand 0']
    %9 = vsyncpa [#allocation6], 0
    %10 = vsyncpa [#allocation7], 0
    %s11 = scalar_lea.sflag [#allocation7], 1
    %12 = vsyncpa %s11, 0
    loop: start=0, step=1, limit=10
    $region2: #{tpu_custom_call.1} parent=1 // loop_pre_header
      _
    $region3: #{tpu_custom_call.1} parent=1 // loop_header
      %s14 = sphi 0, %s18
      %p15 = scmp.ge.s32.totalorder %s14, 10
      %s21 = sphi 0, %s33
      %s22 = sphi 0, %s29
      %s23 = sphi 0, %s21
      %s24 = sphi 0, %s22
      %s25 = sphi 0, %s23
      %s26 = sphi 0, %s24
      %s34 = sphi 0, %s34
      %s36 = sphi 0, %s34
      %s37 = sphi 0, %s36
      %s51 = sphi 0, %s37
      %s55 = sphi 0, %s55
      %s57 = sphi 0, %s55
      %s58 = sphi 0, %s57
      %s72 = sphi 0, %s58
      %s76 = sphi 0, %s76
      %s78 = sphi 0, %s76
      %s79 = sphi 0, %s78
      %s93 = sphi 0, %s79
      %s101 = sphi 0, %s103
      %s104 = sphi 0, %s101
      %s105 = sphi 0, %s104
      %s121 = sphi 0, %s105
    $region4: #{tpu_custom_call.1} parent=1 // loop_header_branch
      %17 = sbr.rel (%p15) target = $region8
    $region5: #{tpu_custom_call.1} parent=1 // loop_body
      %s19 = ssub.s32 %s14, 1
      %s20 = ssub.s32 %s14, 2
      %s27 = sadd.s32 1, %s22
      %p28 = scmp.ge.s32.totalorder %s27, 4
      %s29 = scalar_select %p28, 0, %s27
      %s30 = sadd.s32 1, %s21
      %s31 = scalar_select %p28, %s30, %s21
      %p32 = scmp.ge.s32.totalorder %s31, 2
      %s33 = scalar_select %p32, 0, %s31
      %s35 = sadd.s32 %s34, 1
      %p38 = scmp.eq.s32.totalorder %s14, 7
      %p39 = scmp.ne.s32.totalorder %s34, %s36
      %p40 = scmp.eq.s32.totalorder %s14, 0
      %p41 = por %p39, %p40
      %p42 = scmp.ne.s32.totalorder %s34, %s36
      %p43 = scmp.eq.s32.totalorder %s19, 7
      %p44 = por %p42, %p43
      %p45 = scmp.ne.s32.totalorder %s36, %s37
      %p46 = scmp.eq.s32.totalorder %s19, 0
      %p47 = por %p45, %p46
      %p48 = scmp.ne.s32.totalorder %s36, %s37
      %p49 = scmp.eq.s32.totalorder %s20, 7
      %p50 = por %p48, %p49
      %p52 = scmp.ne.s32.totalorder %s37, %s51
      %p53 = scmp.eq.s32.totalorder %s20, 0
      %p54 = por %p52, %p53
      %s56 = sadd.s32 %s55, 1
      %p59 = scmp.eq.s32.totalorder %s14, 7
      %p60 = scmp.ne.s32.totalorder %s55, %s57
      %p61 = scmp.eq.s32.totalorder %s14, 0
      %p62 = por %p60, %p61
      %p63 = scmp.ne.s32.totalorder %s55, %s57
      %p64 = scmp.eq.s32.totalorder %s19, 7
      %p65 = por %p63, %p64
      %p66 = scmp.ne.s32.totalorder %s57, %s58
      %p67 = scmp.eq.s32.totalorder %s19, 0
      %p68 = por %p66, %p67
      %p69 = scmp.ne.s32.totalorder %s57, %s58
      %p70 = scmp.eq.s32.totalorder %s20, 7
      %p71 = por %p69, %p70
      %p73 = scmp.ne.s32.totalorder %s58, %s72
      %p74 = scmp.eq.s32.totalorder %s20, 0
      %p75 = por %p73, %p74
      %s77 = sadd.s32 %s76, 1
      %p80 = scmp.eq.s32.totalorder %s14, 7
      %p81 = scmp.ne.s32.totalorder %s76, %s78
      %p82 = scmp.eq.s32.totalorder %s14, 0
      %p83 = por %p81, %p82
      %p84 = scmp.ne.s32.totalorder %s76, %s78
      %p85 = scmp.eq.s32.totalorder %s19, 7
      %p86 = por %p84, %p85
      %p87 = scmp.ne.s32.totalorder %s78, %s79
      %p88 = scmp.eq.s32.totalorder %s19, 0
      %p89 = por %p87, %p88
      %p90 = scmp.ne.s32.totalorder %s78, %s79
      %p91 = scmp.eq.s32.totalorder %s20, 7
      %p92 = por %p90, %p91
      %p94 = scmp.ne.s32.totalorder %s79, %s93
      %p95 = scmp.eq.s32.totalorder %s20, 0
      %p96 = por %p94, %p95
      %s97 = ssub.s32 %s21, %s33
      %s98 = ssub.s32 %s22, %s29
      %s99 = sor.u32 %s97, %s98
      %p100 = scmp.eq.s32.totalorder %s99, 0
      %s102 = sadd.s32 %s101, 1
      %s103 = scalar_select %p100, %s101, %s102
      %p106 = pneg %p100
      %p107 = scmp.eq.s32.totalorder %s14, 7
      %p108 = por %p106, %p107
      %p109 = scmp.ne.s32.totalorder %s101, %s104
      %p110 = scmp.eq.s32.totalorder %s14, 0
      %p111 = por %p109, %p110
      %p112 = scmp.ne.s32.totalorder %s101, %s104
      %p113 = scmp.eq.s32.totalorder %s19, 7
      %p114 = por %p112, %p113
      %p115 = scmp.ne.s32.totalorder %s104, %s105
      %p116 = scmp.eq.s32.totalorder %s19, 0
      %p117 = por %p115, %p116
      %p118 = scmp.ne.s32.totalorder %s104, %s105
      %p119 = scmp.eq.s32.totalorder %s20, 7
      %p120 = por %p118, %p119
      %p122 = scmp.ne.s32.totalorder %s105, %s121
      %p123 = scmp.eq.s32.totalorder %s20, 0
      %p124 = por %p122, %p123
      %p125 = scmp.le.s32.totalorder 1, %s14
      %p126 = scmp.lt.s32.totalorder %s14, 9
      %p127 = pnand %p125, %p126
      %p128 = pneg %p127
      // Predicated region
      $region9: #{tpu_custom_call.1} parent=5 // pred_check
        _
      $region10: #{tpu_custom_call.1} parent=5 // pred_check_branch
        %130 = sbr.rel (%p127) target = $region12
      $region11: #{tpu_custom_call.1} parent=5 // pred_region
        %s131 = ssub.s32 %s14, 1
        // Predicated region
        $region13: #{tpu_custom_call.1} parent=11 // pred_check
          %p132 = pneg %p47
        $region14: #{tpu_custom_call.1} parent=11 // pred_check_branch
          %134 = sbr.rel (%p132) target = $region16
        $region15: #{tpu_custom_call.1} parent=11 // pred_region
          _
        $region16: #{tpu_custom_call.1} parent=11 // pred_fallthru
          _
        // Predicated region
        $region17: #{tpu_custom_call.1} parent=11 // pred_check
          %p135 = pneg %p68
        $region18: #{tpu_custom_call.1} parent=11 // pred_check_branch
          %137 = sbr.rel (%p135) target = $region20
        $region19: #{tpu_custom_call.1} parent=11 // pred_region
          _
        $region20: #{tpu_custom_call.1} parent=11 // pred_fallthru
          _
        // Predicated region
        $region21: #{tpu_custom_call.1} parent=11 // pred_check
          %p138 = pneg %p89
        $region22: #{tpu_custom_call.1} parent=11 // pred_check_branch
          %140 = sbr.rel (%p138) target = $region24
        $region23: #{tpu_custom_call.1} parent=11 // pred_region
          %s142 = ssub.s32 3072, 3072
          %143 = vsyncadd [#allocation6], %s142
          %s144 = sshll.u32 [#allocation5], 4
          %s145 = int_to_ptr.vmem [resolvable:$true] %s144
          %150 = dma.hbm_to_vmem [thread:$0]  %s3, 3072, %s145, [#allocation6], 1024, 1024, 64
        $region24: #{tpu_custom_call.1} parent=11 // pred_fallthru
          _
      $region12: #{tpu_custom_call.1} parent=5 // pred_fallthru
        _
      %p151 = scmp.lt.s32.totalorder %s14, 8
      // Predicated region
      $region25: #{tpu_custom_call.1} parent=5 // pred_check
        %p152 = pneg %p151
      $region26: #{tpu_custom_call.1} parent=5 // pred_check_branch
        %154 = sbr.rel (%p152) target = $region28
      $region27: #{tpu_custom_call.1} parent=5 // pred_region
        _
      $region28: #{tpu_custom_call.1} parent=5 // pred_fallthru
        _
      %p155 = scmp.le.s32.totalorder 1, %s14
      %p156 = scmp.lt.s32.totalorder %s14, 9
      %p157 = pnand %p155, %p156
      %p158 = pneg %p157
      // Predicated region
      $region29: #{tpu_custom_call.1} parent=5 // pred_check
        _
      $region30: #{tpu_custom_call.1} parent=5 // pred_check_branch
        %160 = sbr.rel (%p157) target = $region32
      $region31: #{tpu_custom_call.1} parent=5 // pred_region
        %s161 = ssub.s32 %s14, 1
        // Predicated region
        $region33: #{tpu_custom_call.1} parent=31 // pred_check
          %p162 = pneg %p89
        $region34: #{tpu_custom_call.1} parent=31 // pred_check_branch
          %164 = sbr.rel (%p162) target = $region36
        $region35: #{tpu_custom_call.1} parent=31 // pred_region
          %165 = dma.done [#allocation6], 3072
        $region36: #{tpu_custom_call.1} parent=31 // pred_fallthru
          _
        %p166 = pneg %p47
        %p167 = pneg %p44
        %p168 = pneg %p68
        %p169 = pneg %p65
        %p170 = pneg %p89
        %p171 = pneg %p86
        %p172 = pneg %p117
        %p173 = pneg %p114
        %s174 = sand.u32 %s104, 1
        %s175 = scalar_lea.sflag [#allocation7], %s174
        %s176 = sand.u32 %s104, 1
        %s177 = smul.addr %s176, 64
        %s178 = scalar_lea.vmem [#allocation8], %s177
        %s179 = smul.u32 8, %s24
        %p180 = scmp.lt.s32.totalorder %s24, 0
        %s181 = ssub.s32 0, %s24
        %s182 = scalar_select %p180, %s181, %s24
        %s183 = sand.u32 %s182, 1
        %s184 = ssub.s32 0, %s183
        %s185 = scalar_select %p180, %s184, %s183
        %p186 = scmp.ne.s32.totalorder %s185, 0
        %p187 = scmp.lt.s32.totalorder %s185, 0
        %p188 = pnand %p187, %p186
        %p189 = pneg %p188
        %s190 = sadd.s32 %s185, 2
        %s191 = scalar_select %p189, %s190, %s185
        %p192 = scmp.eq.s32.totalorder %s24, 0
        // Predicated region
        $region37: #{tpu_custom_call.1} parent=31 // pred_check
          %p193 = pneg %p192
        $region38: #{tpu_custom_call.1} parent=31 // pred_check_branch
          %195 = sbr.rel (%p193) target = $region40
        $region39: #{tpu_custom_call.1} parent=31 // pred_region
          %s196 = smul.u32 %s23, 32
          %s197 = smul.addr %s196, 64
          %s198 = scalar_lea.hbm %s0, %s197
          %s199 = scalar_lea.vmem [#allocation2], 8
          // Predicated region
          $region41: #{tpu_custom_call.1} parent=39 // pred_check
            _
          $region42: #{tpu_custom_call.1} parent=39 // pred_check_branch
            %201 = sbr.rel target = $region44
          $region43: #{tpu_custom_call.1} parent=39 // pred_region
            %202 = sst [smem:[#allocation11]] [#allocation10]
            %203 = sst [smem:[#allocation12]] [#allocation9]
          $region44: #{tpu_custom_call.1} parent=39 // pred_fallthru
            _
          %205 = shalt.err (0)
          %s207 = sshll.u32 %s199, 4
          %s208 = int_to_ptr.vmem [resolvable:$true] %s207
          %210 = dma.hbm_to_vmem [thread:$0]  %s198, 640, %s208, [#allocation3]
        $region40: #{tpu_custom_call.1} parent=31 // pred_fallthru
          _
        %s211 = sadd.s32 %s24, 1
        %p212 = scmp.lt.s32.totalorder %s211, 3
        // Predicated region
        $region45: #{tpu_custom_call.1} parent=31 // pred_check
          %p213 = pneg %p212
        $region46: #{tpu_custom_call.1} parent=31 // pred_check_branch
          %215 = sbr.rel (%p213) target = $region48
        $region47: #{tpu_custom_call.1} parent=31 // pred_region
          %s216 = ssub.s32 1, %s191
          %s217 = smul.u32 %s211, 4
          %s218 = ssub.s32 %s217, 1
          %s219 = smul.u32 %s218, 256
          %s220 = sshra.s32 %s219, 7
          %s221 = sand.u32 %s219, 127
          %s222 = smul.u32 %s23, 32
          %s223 = sadd.s32 %s220, %s222
          %s224 = smul.addr %s223, 64
          %s225 = scalar_lea.hbm %s0, %s224
          %s226 = smul.u32 %s216, 12
          %s227 = smul.addr %s226, 4
          %s228 = scalar_lea.vmem [#allocation2], %s227
          %s229 = scalar_lea.sflag [#allocation3], %s216
          // Predicated region
          $region49: #{tpu_custom_call.1} parent=47 // pred_check
            _
          $region50: #{tpu_custom_call.1} parent=47 // pred_check_branch
            %231 = sbr.rel target = $region52
          $region51: #{tpu_custom_call.1} parent=47 // pred_region
            %232 = sst [smem:[#allocation11]] [#allocation14]
            %233 = sst [smem:[#allocation12]] [#allocation13]
          $region52: #{tpu_custom_call.1} parent=47 // pred_fallthru
            _
          %235 = shalt.err (0)
          %s237 = sshll.u32 %s228, 4
          %s238 = int_to_ptr.vmem [resolvable:$true] %s237
          %240 = dma.hbm_to_vmem [thread:$0]  %s225, 768, %s238, %s229
        $region48: #{tpu_custom_call.1} parent=31 // pred_fallthru
          _
        %p241 = scmp.eq.s32.totalorder %s211, 3
        // Predicated region
        $region53: #{tpu_custom_call.1} parent=31 // pred_check
          %p242 = pneg %p241
        $region54: #{tpu_custom_call.1} parent=31 // pred_check_branch
          %244 = sbr.rel (%p242) target = $region56
        $region55: #{tpu_custom_call.1} parent=31 // pred_region
          %s245 = ssub.s32 1, %s191
          %s246 = smul.u32 %s211, 4
          %s247 = ssub.s32 %s246, 1
          %s248 = smul.u32 %s247, 256
          %s249 = sshra.s32 %s248, 7
          %s250 = sand.u32 %s248, 127
          %s251 = smul.u32 %s23, 32
          %s252 = sadd.s32 %s249, %s251
          %s253 = smul.addr %s252, 64
          %s254 = scalar_lea.hbm %s0, %s253
          %s255 = smul.u32 %s245, 12
          %s256 = smul.addr %s255, 4
          %s257 = scalar_lea.vmem [#allocation2], %s256
          %s258 = scalar_lea.sflag [#allocation3], %s245
          // Predicated region
          $region57: #{tpu_custom_call.1} parent=55 // pred_check
            _
          $region58: #{tpu_custom_call.1} parent=55 // pred_check_branch
            %260 = sbr.rel target = $region60
          $region59: #{tpu_custom_call.1} parent=55 // pred_region
            %261 = sst [smem:[#allocation11]] [#allocation16]
            %262 = sst [smem:[#allocation12]] [#allocation15]
          $region60: #{tpu_custom_call.1} parent=55 // pred_fallthru
            _
          %264 = shalt.err (0)
          %s266 = sshll.u32 %s257, 4
          %s267 = int_to_ptr.vmem [resolvable:$true] %s266
          %269 = dma.hbm_to_vmem [thread:$0]  %s254, 640, %s267, %s258
        $region56: #{tpu_custom_call.1} parent=31 // pred_fallthru
          _
        // Predicated region
        $region61: #{tpu_custom_call.1} parent=31 // pred_check
          %p270 = pneg %p192
        $region62: #{tpu_custom_call.1} parent=31 // pred_check_branch
          %272 = sbr.rel (%p270) target = $region64
        $region63: #{tpu_custom_call.1} parent=31 // pred_region
          %s273 = scalar_lea.sflag [#allocation3], %s191
          %s274 = smul.u32 4, 1
          %s275 = smul.u32 %s274, 10
          %s276 = sshll.u32 %s275, 4
          %277 = dma.done %s273, %s276
        $region64: #{tpu_custom_call.1} parent=31 // pred_fallthru
          _
        %p278 = scmp.eq.s32.totalorder %s24, 3
        // Predicated region
        $region65: #{tpu_custom_call.1} parent=31 // pred_check
          %p279 = pneg %p278
        $region66: #{tpu_custom_call.1} parent=31 // pred_check_branch
          %281 = sbr.rel (%p279) target = $region68
        $region67: #{tpu_custom_call.1} parent=31 // pred_region
          %s282 = smul.u32 %s24, 4
          %s283 = ssub.s32 %s282, 1
          %s284 = smul.u32 %s283, 256
          %s285 = scalar_lea.sflag [#allocation3], %s191
          %s286 = smul.u32 4, 1
          %s287 = smul.u32 %s286, 10
          %s288 = sshll.u32 %s287, 4
          %289 = dma.done %s285, %s288
        $region68: #{tpu_custom_call.1} parent=31 // pred_fallthru
          _
        %p290 = scmp.gt.s32.totalorder %s24, 0
        %p291 = scmp.lt.s32.totalorder %s24, 3
        %p292 = pnand %p290, %p291
        %p293 = pneg %p292
        // Predicated region
        $region69: #{tpu_custom_call.1} parent=31 // pred_check
          _
        $region70: #{tpu_custom_call.1} parent=31 // pred_check_branch
          %295 = sbr.rel (%p292) target = $region72
        $region71: #{tpu_custom_call.1} parent=31 // pred_region
          %s296 = smul.u32 %s24, 4
          %s297 = ssub.s32 %s296, 1
          %s298 = smul.u32 %s297, 256
          %s299 = scalar_lea.sflag [#allocation3], %s191
          %s300 = smul.u32 4, 1
          %s301 = smul.u32 %s300, 12
          %s302 = sshll.u32 %s301, 4
          %303 = dma.done %s299, %s302
        $region72: #{tpu_custom_call.1} parent=31 // pred_fallthru
          _
        // Predicated region
        $region73: #{tpu_custom_call.1} parent=31 // pred_check
          %p304 = pneg %p192
        $region74: #{tpu_custom_call.1} parent=31 // pred_check_branch
          %306 = sbr.rel (%p304) target = $region76
        $region75: #{tpu_custom_call.1} parent=31 // pred_region
          %307 = vst [vmem:[#allocation2] sm:$0xff] 0.0
        $region76: #{tpu_custom_call.1} parent=31 // pred_fallthru
          _
        // Predicated region
        $region77: #{tpu_custom_call.1} parent=31 // pred_check
          %p308 = pneg %p278
        $region78: #{tpu_custom_call.1} parent=31 // pred_check_branch
          %310 = sbr.rel (%p308) target = $region80
        $region79: #{tpu_custom_call.1} parent=31 // pred_region
          %s311 = scalar_lea.vmem [#allocation2], 48
          %312 = vst [vmem:[%s311 + $0x28] sm:$0xff] 0.0
        $region80: #{tpu_custom_call.1} parent=31 // pred_fallthru
          _
        %s313 = smul.u32 %s191, 12
        %s314 = smul.addr %s313, 4
        %s315 = scalar_lea.vmem [#allocation2], %s314
        %v316 = vld [vmem:[%s315] sm:$0xff]
        %v317 = vld [vmem:[%s315 + $0x8] sm:$0xff]
        %v318 = vld [vmem:[%s315 + $0x10] sm:$0xff]
        %v319 = vld [vmem:[%s315 + $0x18] sm:$0xff]
        %v320 = vld [vmem:[%s315 + $0x20] sm:$0xff]
        %v321 = vld [vmem:[%s315 + $0x28] sm:$0xff]
        %v328 = vcombine.high %v316, %v316
        %v329 = vcombine.high %v317, %v317
        %v330 = vcombine.high %v318, %v318
        %v331 = vcombine.high %v319, %v319
        %v332 = vcombine.high %v321, %v321
        %338 = vrot.lane.b32.xlu0 %v316, 16
        %v339 = vpop.permute.xlu0 %338
        %340 = vrot.lane.b32.xlu0 %v328, 16
        %v341 = vpop.permute.xlu0 %340
        %342 = vrot.lane.b32.xlu0 %v317, 16
        %v343 = vpop.permute.xlu0 %342
        %344 = vrot.lane.b32.xlu0 %v329, 16
        %v345 = vpop.permute.xlu0 %344
        %346 = vrot.lane.b32.xlu0 %v318, 16
        %v347 = vpop.permute.xlu0 %346
        %348 = vrot.lane.b32.xlu0 %v330, 16
        %v349 = vpop.permute.xlu0 %348
        %350 = vrot.lane.b32.xlu0 %v319, 16
        %v351 = vpop.permute.xlu0 %350
        %352 = vrot.lane.b32.xlu0 %v331, 16
        %v353 = vpop.permute.xlu0 %352
        %354 = vrot.lane.b32.xlu0 %v332, 16
        %v355 = vpop.permute.xlu0 %354
        %v356 = vlaneseq
        %v357 = vand.u32 %v356, 127
        %vm358 = vcmp.lt.s32.totalorder %v357, 16
        %v359 = vsel %vm358, %v351, %v353
        %v360 = vsel %vm358, %v349, %v351
        %v361 = vsel %vm358, %v347, %v349
        %v362 = vsel %vm358, %v345, %v347
        %v363 = vsel %vm358, %v343, %v345
        %v364 = vsel %vm358, %v341, %v343
        %v365 = vsel %vm358, %v339, %v341
        %v366 = vsel %vm358, %v355, %v339
        %v367 = vld [vmem:[#allocation5] ss:$8 sm:$0xf]
        %v368 = vld [vmem:[#allocation5] ss:$8 sm:$0xf0]
        %v369 = vor.u32 %v367, %v368
        %v371 = vlaneseq
        %v372 = vshrl.u32 %v371, 7
        %v373 = vsub.s32 0, %v372
        %v374 = vrot.slane %v369, %v373
        %v375 = vlaneseq
        %v376 = vshrl.u32 %v375, 7
        %v377 = vsub.s32 1, %v376
        %v378 = vrot.slane %v369, %v377
        %v379 = vlaneseq
        %v380 = vshrl.u32 %v379, 7
        %v381 = vsub.s32 2, %v380
        %v382 = vrot.slane %v369, %v381
        %v383 = vlaneseq
        %v384 = vshrl.u32 %v383, 7
        %v385 = vsub.s32 3, %v384
        %v386 = vrot.slane %v369, %v385
        %v387 = vlaneseq
        %v388 = vshrl.u32 %v387, 7
        %v389 = vsub.s32 4, %v388
        %v390 = vrot.slane %v369, %v389
        %v391 = vlaneseq
        %v392 = vshrl.u32 %v391, 7
        %v393 = vsub.s32 5, %v392
        %v394 = vrot.slane %v369, %v393
        %v395 = vlaneseq
        %v396 = vshrl.u32 %v395, 7
        %v397 = vsub.s32 6, %v396
        %v398 = vrot.slane %v369, %v397
        %v399 = vlaneseq
        %v400 = vshrl.u32 %v399, 7
        %v401 = vsub.s32 7, %v400
        %v402 = vrot.slane %v369, %v401
        %v411 = vmul.f32 %v366, %v374
        %v412 = vmul.f32 %v365, %v378
        %v413 = vmul.f32 %v364, %v382
        %v414 = vmul.f32 %v363, %v386
        %v415 = vmul.f32 %v362, %v390
        %v416 = vmul.f32 %v361, %v394
        %v417 = vmul.f32 %v360, %v398
        %v418 = vmul.f32 %v359, %v402
        %419 = vrot.lane.b32.xlu0 %v316, 1
        %v420 = vpop.permute.xlu0 %419
        %421 = vrot.lane.b32.xlu0 %v328, 1
        %v422 = vpop.permute.xlu0 %421
        %423 = vrot.lane.b32.xlu0 %v317, 1
        %v424 = vpop.permute.xlu0 %423
        %425 = vrot.lane.b32.xlu0 %v329, 1
        %v426 = vpop.permute.xlu0 %425
        %427 = vrot.lane.b32.xlu0 %v318, 1
        %v428 = vpop.permute.xlu0 %427
        %429 = vrot.lane.b32.xlu0 %v330, 1
        %v430 = vpop.permute.xlu0 %429
        %431 = vrot.lane.b32.xlu0 %v319, 1
        %v432 = vpop.permute.xlu0 %431
        %433 = vrot.lane.b32.xlu0 %v331, 1
        %v434 = vpop.permute.xlu0 %433
        %435 = vrot.lane.b32.xlu0 %v332, 1
        %v436 = vpop.permute.xlu0 %435
        %vm437 = vcmp.lt.s32.totalorder %v357, 1
        %v438 = vsel %vm437, %v432, %v434
        %v439 = vsel %vm437, %v430, %v432
        %v440 = vsel %vm437, %v428, %v430
        %v441 = vsel %vm437, %v426, %v428
        %v442 = vsel %vm437, %v424, %v426
        %v443 = vsel %vm437, %v422, %v424
        %v444 = vsel %vm437, %v420, %v422
        %v445 = vsel %vm437, %v436, %v420
        %s446 = scalar_lea.vmem [#allocation5], 1
        %v447 = vld [vmem:[%s446] ss:$8 sm:$0xf]
        %v448 = vld [vmem:[%s446] ss:$8 sm:$0xf0]
        %v449 = vor.u32 %v447, %v448
        %v451 = vlaneseq
        %v452 = vshrl.u32 %v451, 7
        %v453 = vsub.s32 0, %v452
        %v454 = vrot.slane %v449, %v453
        %v455 = vlaneseq
        %v456 = vshrl.u32 %v455, 7
        %v457 = vsub.s32 1, %v456
        %v458 = vrot.slane %v449, %v457
        %v459 = vlaneseq
        %v460 = vshrl.u32 %v459, 7
        %v461 = vsub.s32 2, %v460
        %v462 = vrot.slane %v449, %v461
        %v463 = vlaneseq
        %v464 = vshrl.u32 %v463, 7
        %v465 = vsub.s32 3, %v464
        %v466 = vrot.slane %v449, %v465
        %v467 = vlaneseq
        %v468 = vshrl.u32 %v467, 7
        %v469 = vsub.s32 4, %v468
        %v470 = vrot.slane %v449, %v469
        %v471 = vlaneseq
        %v472 = vshrl.u32 %v471, 7
        %v473 = vsub.s32 5, %v472
        %v474 = vrot.slane %v449, %v473
        %v475 = vlaneseq
        %v476 = vshrl.u32 %v475, 7
        %v477 = vsub.s32 6, %v476
        %v478 = vrot.slane %v449, %v477
        %v479 = vlaneseq
        %v480 = vshrl.u32 %v479, 7
        %v481 = vsub.s32 7, %v480
        %v482 = vrot.slane %v449, %v481
        %v491 = vmul.f32 %v445, %v454
        %v492 = vmul.f32 %v444, %v458
        %v493 = vmul.f32 %v443, %v462
        %v494 = vmul.f32 %v442, %v466
        %v495 = vmul.f32 %v441, %v470
        %v496 = vmul.f32 %v440, %v474
        %v497 = vmul.f32 %v439, %v478
        %v498 = vmul.f32 %v438, %v482
        %v507 = vrot.slane %v491, 4
        %v508 = vrot.slane %v492, 4
        %v509 = vrot.slane %v493, 4
        %v510 = vrot.slane %v494, 4
        %v511 = vrot.slane %v495, 4
        %v512 = vrot.slane %v496, 4
        %v513 = vrot.slane %v497, 4
        %v514 = vrot.slane %v498, 4
        %vm523 = vcmask 1043456
        %v524 = vsel %vm523, %v411, %v507
        %v525 = vsel %vm523, %v412, %v508
        %v526 = vsel %vm523, %v413, %v509
        %v527 = vsel %vm523, %v414, %v510
        %v528 = vsel %vm523, %v415, %v511
        %v529 = vsel %vm523, %v416, %v512
        %v530 = vsel %vm523, %v417, %v513
        %v531 = vsel %vm523, %v418, %v514
        %532 = vst [vmem:[#allocation4] sm:$0xff] %v524
        %533 = vst [vmem:[#allocation4 + $0x8] sm:$0xff] %v525
        %534 = vst [vmem:[#allocation4 + $0x10] sm:$0xff] %v526
        %535 = vst [vmem:[#allocation4 + $0x18] sm:$0xff] %v527
        %536 = vst [vmem:[#allocation4 + $0x20] sm:$0xff] %v528
        %537 = vst [vmem:[#allocation4 + $0x28] sm:$0xff] %v529
        %538 = vst [vmem:[#allocation4 + $0x30] sm:$0xff] %v530
        %539 = vst [vmem:[#allocation4 + $0x38] sm:$0xff] %v531
        %s540 = scalar_lea.vmem [#allocation5], 3
        %v541 = vld [vmem:[%s540] ss:$8 sm:$0xf]
        %v542 = vld [vmem:[%s540] ss:$8 sm:$0xf0]
        %v543 = vor.u32 %v541, %v542
        %v545 = vlaneseq
        %v546 = vshrl.u32 %v545, 7
        %v547 = vsub.s32 0, %v546
        %v548 = vrot.slane %v543, %v547
        %v549 = vlaneseq
        %v550 = vshrl.u32 %v549, 7
        %v551 = vsub.s32 1, %v550
        %v552 = vrot.slane %v543, %v551
        %v553 = vlaneseq
        %v554 = vshrl.u32 %v553, 7
        %v555 = vsub.s32 2, %v554
        %v556 = vrot.slane %v543, %v555
        %v557 = vlaneseq
        %v558 = vshrl.u32 %v557, 7
        %v559 = vsub.s32 3, %v558
        %v560 = vrot.slane %v543, %v559
        %v561 = vlaneseq
        %v562 = vshrl.u32 %v561, 7
        %v563 = vsub.s32 4, %v562
        %v564 = vrot.slane %v543, %v563
        %v565 = vlaneseq
        %v566 = vshrl.u32 %v565, 7
        %v567 = vsub.s32 5, %v566
        %v568 = vrot.slane %v543, %v567
        %v569 = vlaneseq
        %v570 = vshrl.u32 %v569, 7
        %v571 = vsub.s32 6, %v570
        %v572 = vrot.slane %v543, %v571
        %v573 = vlaneseq
        %v574 = vshrl.u32 %v573, 7
        %v575 = vsub.s32 7, %v574
        %v576 = vrot.slane %v543, %v575
        %v577 = vcombine.low %v548, %v552
        %v578 = vcombine.low %v556, %v560
        %v579 = vcombine.low %v564, %v568
        %v580 = vcombine.low %v572, %v576
        %581 = vrot.lane.b32.xlu0 %v577, 1
        %v582 = vpop.permute.xlu0 %581
        %583 = vrot.lane.b32.xlu0 %v578, 1
        %v584 = vpop.permute.xlu0 %583
        %585 = vrot.lane.b32.xlu0 %v579, 1
        %v586 = vpop.permute.xlu0 %585
        %587 = vrot.lane.b32.xlu0 %v580, 1
        %v588 = vpop.permute.xlu0 %587
        %v589 = vrot.slane %v582, 4
        %v590 = vrot.slane %v584, 4
        %v591 = vrot.slane %v586, 4
        %v592 = vrot.slane %v588, 4
        %vm593 = vcmask 7168
        %v594 = vsel %vm593, %v589, %v582
        %v595 = vsel %vm523, %v589, %v590
        %v596 = vsel %vm593, %v595, %v584
        %v597 = vsel %vm523, %v590, %v591
        %v598 = vsel %vm593, %v597, %v586
        %v599 = vsel %vm523, %v591, %v592
        %v600 = vsel %vm593, %v599, %v588
        %v606 = vmul.f32 %v316, %v594
        %v607 = vmul.f32 %v317, %v596
        %v608 = vmul.f32 %v318, %v598
        %v609 = vmul.f32 %v319, %v600
        %v610 = vmul.f32 %v320, %v592
        %v616 = vcombine.low %v606, %v606
        %v617 = vcombine.low %v607, %v607
        %v618 = vcombine.low %v608, %v608
        %v619 = vcombine.low %v609, %v609
        %v620 = vcombine.low %v610, %v610
        %621 = vrot.lane.b32.xlu0 %v616, 127
        %v622 = vpop.permute.xlu0 %621
        %623 = vrot.lane.b32.xlu0 %v606, 127
        %v624 = vpop.permute.xlu0 %623
        %625 = vrot.lane.b32.xlu0 %v617, 127
        %v626 = vpop.permute.xlu0 %625
        %627 = vrot.lane.b32.xlu0 %v607, 127
        %v628 = vpop.permute.xlu0 %627
        %629 = vrot.lane.b32.xlu0 %v618, 127
        %v630 = vpop.permute.xlu0 %629
        %631 = vrot.lane.b32.xlu0 %v608, 127
        %v632 = vpop.permute.xlu0 %631
        %633 = vrot.lane.b32.xlu0 %v619, 127
        %v634 = vpop.permute.xlu0 %633
        %635 = vrot.lane.b32.xlu0 %v609, 127
        %v636 = vpop.permute.xlu0 %635
        %637 = vrot.lane.b32.xlu0 %v620, 127
        %v638 = vpop.permute.xlu0 %637
        %vm639 = vcmask 1039360
        %v640 = vsel %vm639, %v622, %v624
        %v641 = vsel %vm639, %v624, %v626
        %v642 = vsel %vm639, %v626, %v628
        %v643 = vsel %vm639, %v628, %v630
        %v644 = vsel %vm639, %v630, %v632
        %v645 = vsel %vm639, %v632, %v634
        %v646 = vsel %vm639, %v634, %v636
        %v647 = vsel %vm639, %v636, %v638
        %v656 = vsel %vm523, %v316, %v640
        %v657 = vsel %vm523, %v328, %v641
        %v658 = vsel %vm523, %v317, %v642
        %v659 = vsel %vm523, %v329, %v643
        %v660 = vsel %vm523, %v318, %v644
        %v661 = vsel %vm523, %v330, %v645
        %v662 = vsel %vm523, %v319, %v646
        %v663 = vsel %vm523, %v331, %v647
        %664 = vst [vmem:[#allocation4 + $0x40] sm:$0xff] %v656
        %665 = vst [vmem:[#allocation4 + $0x48] sm:$0xff] %v657
        %666 = vst [vmem:[#allocation4 + $0x50] sm:$0xff] %v658
        %667 = vst [vmem:[#allocation4 + $0x58] sm:$0xff] %v659
        %668 = vst [vmem:[#allocation4 + $0x60] sm:$0xff] %v660
        %669 = vst [vmem:[#allocation4 + $0x68] sm:$0xff] %v661
        %670 = vst [vmem:[#allocation4 + $0x70] sm:$0xff] %v662
        %671 = vst [vmem:[#allocation4 + $0x78] sm:$0xff] %v663
        %s672 = scalar_lea.vmem [#allocation5], 4
        %v673 = vld [vmem:[%s672] ss:$8 sm:$0xf]
        %v674 = vld [vmem:[%s672] ss:$8 sm:$0xf0]
        %v675 = vor.u32 %v673, %v674
        %v677 = vlaneseq
        %v678 = vshrl.u32 %v677, 7
        %v679 = vsub.s32 0, %v678
        %v680 = vrot.slane %v675, %v679
        %v681 = vlaneseq
        %v682 = vshrl.u32 %v681, 7
        %v683 = vsub.s32 1, %v682
        %v684 = vrot.slane %v675, %v683
        %v685 = vlaneseq
        %v686 = vshrl.u32 %v685, 7
        %v687 = vsub.s32 2, %v686
        %v688 = vrot.slane %v675, %v687
        %v689 = vlaneseq
        %v690 = vshrl.u32 %v689, 7
        %v691 = vsub.s32 3, %v690
        %v692 = vrot.slane %v675, %v691
        %v693 = vlaneseq
        %v694 = vshrl.u32 %v693, 7
        %v695 = vsub.s32 4, %v694
        %v696 = vrot.slane %v675, %v695
        %v697 = vlaneseq
        %v698 = vshrl.u32 %v697, 7
        %v699 = vsub.s32 5, %v698
        %v700 = vrot.slane %v675, %v699
        %v701 = vlaneseq
        %v702 = vshrl.u32 %v701, 7
        %v703 = vsub.s32 6, %v702
        %v704 = vrot.slane %v675, %v703
        %v705 = vlaneseq
        %v706 = vshrl.u32 %v705, 7
        %v707 = vsub.s32 7, %v706
        %v708 = vrot.slane %v675, %v707
        %v709 = vcombine.low %v680, %v684
        %v710 = vcombine.low %v688, %v692
        %v711 = vcombine.low %v696, %v700
        %v712 = vcombine.low %v704, %v708
        %713 = vrot.lane.b32.xlu0 %v709, 16
        %v714 = vpop.permute.xlu0 %713
        %715 = vrot.lane.b32.xlu0 %v710, 16
        %v716 = vpop.permute.xlu0 %715
        %717 = vrot.lane.b32.xlu0 %v711, 16
        %v718 = vpop.permute.xlu0 %717
        %719 = vrot.lane.b32.xlu0 %v712, 16
        %v720 = vpop.permute.xlu0 %719
        %v721 = vrot.slane %v714, 4
        %v722 = vrot.slane %v716, 4
        %v723 = vrot.slane %v718, 4
        %v724 = vrot.slane %v720, 4
        %vm725 = vcmask 130048
        %v726 = vsel %vm725, %v721, %v714
        %v727 = vsel %vm523, %v721, %v722
        %v728 = vsel %vm725, %v727, %v716
        %v729 = vsel %vm523, %v722, %v723
        %v730 = vsel %vm725, %v729, %v718
        %v731 = vsel %vm523, %v723, %v724
        %v732 = vsel %vm725, %v731, %v720
        %v738 = vmul.f32 %v316, %v726
        %v739 = vmul.f32 %v317, %v728
        %v740 = vmul.f32 %v318, %v730
        %v741 = vmul.f32 %v319, %v732
        %v742 = vmul.f32 %v320, %v724
        %s743 = scalar_lea.vmem [#allocation5], 5
        %v744 = vld [vmem:[%s743] ss:$8 sm:$0xf]
        %v745 = vld [vmem:[%s743] ss:$8 sm:$0xf0]
        %v746 = vor.u32 %v744, %v745
        %v748 = vlaneseq
        %v749 = vshrl.u32 %v748, 7
        %v750 = vsub.s32 0, %v749
        %v751 = vrot.slane %v746, %v750
        %v752 = vlaneseq
        %v753 = vshrl.u32 %v752, 7
        %v754 = vsub.s32 1, %v753
        %v755 = vrot.slane %v746, %v754
        %v756 = vlaneseq
        %v757 = vshrl.u32 %v756, 7
        %v758 = vsub.s32 2, %v757
        %v759 = vrot.slane %v746, %v758
        %v760 = vlaneseq
        %v761 = vshrl.u32 %v760, 7
        %v762 = vsub.s32 3, %v761
        %v763 = vrot.slane %v746, %v762
        %v764 = vlaneseq
        %v765 = vshrl.u32 %v764, 7
        %v766 = vsub.s32 4, %v765
        %v767 = vrot.slane %v746, %v766
        %v768 = vlaneseq
        %v769 = vshrl.u32 %v768, 7
        %v770 = vsub.s32 5, %v769
        %v771 = vrot.slane %v746, %v770
        %v772 = vlaneseq
        %v773 = vshrl.u32 %v772, 7
        %v774 = vsub.s32 6, %v773
        %v775 = vrot.slane %v746, %v774
        %v776 = vlaneseq
        %v777 = vshrl.u32 %v776, 7
        %v778 = vsub.s32 7, %v777
        %v779 = vrot.slane %v746, %v778
        %780 = vrot.lane.b32.xlu0 %v316, 17
        %v781 = vpop.permute.xlu0 %780
        %782 = vrot.lane.b32.xlu0 %v317, 17
        %v783 = vpop.permute.xlu0 %782
        %784 = vrot.lane.b32.xlu0 %v318, 17
        %v785 = vpop.permute.xlu0 %784
        %786 = vrot.lane.b32.xlu0 %v319, 17
        %v787 = vpop.permute.xlu0 %786
        %788 = vrot.lane.b32.xlu0 %v320, 17
        %v789 = vpop.permute.xlu0 %788
        %v790 = vrot.slane %v781, 4
        %v791 = vrot.slane %v783, 4
        %v792 = vrot.slane %v785, 4
        %v793 = vrot.slane %v787, 4
        %v794 = vrot.slane %v789, 4
        %v795 = vsel %vm523, %v790, %v791
        %vm796 = vcmask 138240
        %v797 = vsel %vm796, %v795, %v783
        %v798 = vsel %vm523, %v791, %v792
        %v799 = vsel %vm796, %v798, %v785
        %v800 = vsel %vm523, %v792, %v793
        %v801 = vsel %vm796, %v800, %v787
        %v802 = vsel %vm523, %v793, %v794
        %v803 = vsel %vm796, %v802, %v789
        %v808 = vcombine.low %v751, %v755
        %v809 = vcombine.low %v759, %v763
        %v810 = vcombine.low %v767, %v771
        %v811 = vcombine.low %v775, %v779
        %v816 = vmul.f32 %v797, %v808
        %v817 = vmul.f32 %v799, %v809
        %v818 = vmul.f32 %v801, %v810
        %v819 = vmul.f32 %v803, %v811
        %v824 = vcombine.high %v738, %v738
        %v825 = vcombine.high %v739, %v739
        %v826 = vcombine.high %v740, %v740
        %v827 = vcombine.high %v741, %v741
        %v836 = vcombine.low %v816, %v816
        %v837 = vcombine.low %v817, %v817
        %v838 = vcombine.low %v818, %v818
        %v839 = vcombine.low %v819, %v819
        %840 = vrot.lane.b32.xlu0 %v836, 16
        %v841 = vpop.permute.xlu0 %840
        %842 = vrot.lane.b32.xlu0 %v816, 16
        %v843 = vpop.permute.xlu0 %842
        %844 = vrot.lane.b32.xlu0 %v837, 16
        %v845 = vpop.permute.xlu0 %844
        %846 = vrot.lane.b32.xlu0 %v817, 16
        %v847 = vpop.permute.xlu0 %846
        %848 = vrot.lane.b32.xlu0 %v838, 16
        %v849 = vpop.permute.xlu0 %848
        %850 = vrot.lane.b32.xlu0 %v818, 16
        %v851 = vpop.permute.xlu0 %850
        %852 = vrot.lane.b32.xlu0 %v839, 16
        %v853 = vpop.permute.xlu0 %852
        %854 = vrot.lane.b32.xlu0 %v819, 16
        %v855 = vpop.permute.xlu0 %854
        %v856 = vsel %vm725, %v841, %v843
        %v857 = vsel %vm725, %v843, %v845
        %v858 = vsel %vm725, %v845, %v847
        %v859 = vsel %vm725, %v847, %v849
        %v860 = vsel %vm725, %v849, %v851
        %v861 = vsel %vm725, %v851, %v853
        %v862 = vsel %vm725, %v853, %v855
        %v872 = vsel %vm523, %v738, %v841
        %v873 = vsel %vm523, %v824, %v856
        %v874 = vsel %vm523, %v739, %v857
        %v875 = vsel %vm523, %v825, %v858
        %v876 = vsel %vm523, %v740, %v859
        %v877 = vsel %vm523, %v826, %v860
        %v878 = vsel %vm523, %v741, %v861
        %v879 = vsel %vm523, %v827, %v862
        %v880 = vsel %vm523, %v742, %v855
        %890 = vrot.lane.b32.xlu0 %v872, 112
        %v891 = vpop.permute.xlu0 %890
        %892 = vrot.lane.b32.xlu0 %v873, 112
        %v893 = vpop.permute.xlu0 %892
        %894 = vrot.lane.b32.xlu0 %v874, 112
        %v895 = vpop.permute.xlu0 %894
        %896 = vrot.lane.b32.xlu0 %v875, 112
        %v897 = vpop.permute.xlu0 %896
        %898 = vrot.lane.b32.xlu0 %v876, 112
        %v899 = vpop.permute.xlu0 %898
        %900 = vrot.lane.b32.xlu0 %v877, 112
        %v901 = vpop.permute.xlu0 %900
        %902 = vrot.lane.b32.xlu0 %v878, 112
        %v903 = vpop.permute.xlu0 %902
        %904 = vrot.lane.b32.xlu0 %v879, 112
        %v905 = vpop.permute.xlu0 %904
        %906 = vrot.lane.b32.xlu0 %v880, 112
        %v907 = vpop.permute.xlu0 %906
        %vm908 = vcmask 916480
        %v909 = vsel %vm908, %v891, %v893
        %v910 = vsel %vm908, %v893, %v895
        %v911 = vsel %vm908, %v895, %v897
        %v912 = vsel %vm908, %v897, %v899
        %v913 = vsel %vm908, %v899, %v901
        %v914 = vsel %vm908, %v901, %v903
        %v915 = vsel %vm908, %v903, %v905
        %v916 = vsel %vm908, %v905, %v907
        %925 = vst [vmem:[#allocation4 + $0x80] sm:$0xff] %v909
        %926 = vst [vmem:[#allocation4 + $0x88] sm:$0xff] %v910
        %927 = vst [vmem:[#allocation4 + $0x90] sm:$0xff] %v911
        %928 = vst [vmem:[#allocation4 + $0x98] sm:$0xff] %v912
        %929 = vst [vmem:[#allocation4 + $0xa0] sm:$0xff] %v913
        %930 = vst [vmem:[#allocation4 + $0xa8] sm:$0xff] %v914
        %931 = vst [vmem:[#allocation4 + $0xb0] sm:$0xff] %v915
        %932 = vst [vmem:[#allocation4 + $0xb8] sm:$0xff] %v916
        %s933 = scalar_lea.vmem [#allocation5], 6
        %v934 = vld [vmem:[%s933] ss:$8 sm:$0xf]
        %v935 = vld [vmem:[%s933] ss:$8 sm:$0xf0]
        %v936 = vor.u32 %v934, %v935
        %v938 = vlaneseq
        %v939 = vshrl.u32 %v938, 7
        %v940 = vsub.s32 0, %v939
        %v941 = vrot.slane %v936, %v940
        %v942 = vlaneseq
        %v943 = vshrl.u32 %v942, 7
        %v944 = vsub.s32 1, %v943
        %v945 = vrot.slane %v936, %v944
        %v946 = vlaneseq
        %v947 = vshrl.u32 %v946, 7
        %v948 = vsub.s32 2, %v947
        %v949 = vrot.slane %v936, %v948
        %v950 = vlaneseq
        %v951 = vshrl.u32 %v950, 7
        %v952 = vsub.s32 3, %v951
        %v953 = vrot.slane %v936, %v952
        %v954 = vlaneseq
        %v955 = vshrl.u32 %v954, 7
        %v956 = vsub.s32 4, %v955
        %v957 = vrot.slane %v936, %v956
        %v958 = vlaneseq
        %v959 = vshrl.u32 %v958, 7
        %v960 = vsub.s32 5, %v959
        %v961 = vrot.slane %v936, %v960
        %v962 = vlaneseq
        %v963 = vshrl.u32 %v962, 7
        %v964 = vsub.s32 6, %v963
        %v965 = vrot.slane %v936, %v964
        %v966 = vlaneseq
        %v967 = vshrl.u32 %v966, 7
        %v968 = vsub.s32 7, %v967
        %v969 = vrot.slane %v936, %v968
        %970 = vrot.lane.b32.xlu0 %v316, 16
        %v971 = vpop.permute.xlu0 %970
        %972 = vrot.lane.b32.xlu0 %v317, 16
        %v973 = vpop.permute.xlu0 %972
        %974 = vrot.lane.b32.xlu0 %v318, 16
        %v975 = vpop.permute.xlu0 %974
        %976 = vrot.lane.b32.xlu0 %v319, 16
        %v977 = vpop.permute.xlu0 %976
        %978 = vrot.lane.b32.xlu0 %v320, 16
        %v979 = vpop.permute.xlu0 %978
        %v980 = vrot.slane %v971, 4
        %v981 = vrot.slane %v973, 4
        %v982 = vrot.slane %v975, 4
        %v983 = vrot.slane %v977, 4
        %v984 = vrot.slane %v979, 4
        %v985 = vsel %vm523, %v980, %v981
        %v986 = vsel %vm725, %v985, %v973
        %v987 = vsel %vm523, %v981, %v982
        %v988 = vsel %vm725, %v987, %v975
        %v989 = vsel %vm523, %v982, %v983
        %v990 = vsel %vm725, %v989, %v977
        %v991 = vsel %vm523, %v983, %v984
        %v992 = vsel %vm725, %v991, %v979
        %v997 = vcombine.low %v941, %v945
        %v998 = vcombine.low %v949, %v953
        %v999 = vcombine.low %v957, %v961
        %v1000 = vcombine.low %v965, %v969
        %v1005 = vmul.f32 %v986, %v997
        %v1006 = vmul.f32 %v988, %v998
        %v1007 = vmul.f32 %v990, %v999
        %v1008 = vmul.f32 %v992, %v1000
        %s1009 = scalar_lea.vmem [#allocation5], 7
        %v1010 = vld [vmem:[%s1009] ss:$8 sm:$0xf]
        %v1011 = vld [vmem:[%s1009] ss:$8 sm:$0xf0]
        %v1012 = vor.u32 %v1010, %v1011
        %v1014 = vlaneseq
        %v1015 = vshrl.u32 %v1014, 7
        %v1016 = vsub.s32 0, %v1015
        %v1017 = vrot.slane %v1012, %v1016
        %v1018 = vlaneseq
        %v1019 = vshrl.u32 %v1018, 7
        %v1020 = vsub.s32 1, %v1019
        %v1021 = vrot.slane %v1012, %v1020
        %v1022 = vlaneseq
        %v1023 = vshrl.u32 %v1022, 7
        %v1024 = vsub.s32 2, %v1023
        %v1025 = vrot.slane %v1012, %v1024
        %v1026 = vlaneseq
        %v1027 = vshrl.u32 %v1026, 7
        %v1028 = vsub.s32 3, %v1027
        %v1029 = vrot.slane %v1012, %v1028
        %v1030 = vlaneseq
        %v1031 = vshrl.u32 %v1030, 7
        %v1032 = vsub.s32 4, %v1031
        %v1033 = vrot.slane %v1012, %v1032
        %v1034 = vlaneseq
        %v1035 = vshrl.u32 %v1034, 7
        %v1036 = vsub.s32 5, %v1035
        %v1037 = vrot.slane %v1012, %v1036
        %v1038 = vlaneseq
        %v1039 = vshrl.u32 %v1038, 7
        %v1040 = vsub.s32 6, %v1039
        %v1041 = vrot.slane %v1012, %v1040
        %v1042 = vlaneseq
        %v1043 = vshrl.u32 %v1042, 7
        %v1044 = vsub.s32 7, %v1043
        %v1045 = vrot.slane %v1012, %v1044
        %1046 = vrot.lane.b32.xlu0 %v316, 15
        %v1047 = vpop.permute.xlu0 %1046
        %1048 = vrot.lane.b32.xlu0 %v317, 15
        %v1049 = vpop.permute.xlu0 %1048
        %1050 = vrot.lane.b32.xlu0 %v318, 15
        %v1051 = vpop.permute.xlu0 %1050
        %1052 = vrot.lane.b32.xlu0 %v319, 15
        %v1053 = vpop.permute.xlu0 %1052
        %1054 = vrot.lane.b32.xlu0 %v320, 15
        %v1055 = vpop.permute.xlu0 %1054
        %v1056 = vrot.slane %v1047, 4
        %v1057 = vrot.slane %v1049, 4
        %v1058 = vrot.slane %v1051, 4
        %v1059 = vrot.slane %v1053, 4
        %v1060 = vrot.slane %v1055, 4
        %v1061 = vsel %vm523, %v1056, %v1057
        %vm1062 = vcmask 121856
        %v1063 = vsel %vm1062, %v1061, %v1049
        %v1064 = vsel %vm523, %v1057, %v1058
        %v1065 = vsel %vm1062, %v1064, %v1051
        %v1066 = vsel %vm523, %v1058, %v1059
        %v1067 = vsel %vm1062, %v1066, %v1053
        %v1068 = vsel %vm523, %v1059, %v1060
        %v1069 = vsel %vm1062, %v1068, %v1055
        %v1074 = vcombine.low %v1017, %v1021
        %v1075 = vcombine.low %v1025, %v1029
        %v1076 = vcombine.low %v1033, %v1037
        %v1077 = vcombine.low %v1041, %v1045
        %v1082 = vmul.f32 %v1063, %v1074
        %v1083 = vmul.f32 %v1065, %v1075
        %v1084 = vmul.f32 %v1067, %v1076
        %v1085 = vmul.f32 %v1069, %v1077
        %v1090 = vcombine.high %v1005, %v1005
        %v1091 = vcombine.high %v1006, %v1006
        %v1092 = vcombine.high %v1007, %v1007
        %v1093 = vcombine.high %v1008, %v1008
        %v1102 = vcombine.low %v1082, %v1082
        %v1103 = vcombine.low %v1083, %v1083
        %v1104 = vcombine.low %v1084, %v1084
        %v1105 = vcombine.low %v1085, %v1085
        %v1110 = vsel %vm523, %v1005, %v1102
        %v1111 = vsel %vm523, %v1090, %v1082
        %v1112 = vsel %vm523, %v1006, %v1103
        %v1113 = vsel %vm523, %v1091, %v1083
        %v1114 = vsel %vm523, %v1007, %v1104
        %v1115 = vsel %vm523, %v1092, %v1084
        %v1116 = vsel %vm523, %v1008, %v1105
        %v1117 = vsel %vm523, %v1093, %v1085
        %1118 = vst [vmem:[#allocation4 + $0xc0] sm:$0xff] %v1110
        %1119 = vst [vmem:[#allocation4 + $0xc8] sm:$0xff] %v1111
        %1120 = vst [vmem:[#allocation4 + $0xd0] sm:$0xff] %v1112
        %1121 = vst [vmem:[#allocation4 + $0xd8] sm:$0xff] %v1113
        %1122 = vst [vmem:[#allocation4 + $0xe0] sm:$0xff] %v1114
        %1123 = vst [vmem:[#allocation4 + $0xe8] sm:$0xff] %v1115
        %1124 = vst [vmem:[#allocation4 + $0xf0] sm:$0xff] %v1116
        %1125 = vst [vmem:[#allocation4 + $0xf8] sm:$0xff] %v1117
        %s1126 = scalar_lea.vmem [#allocation5], 64
        %v1127 = vld [vmem:[%s1126] ss:$8 sm:$0xf]
        %v1128 = vld [vmem:[%s1126] ss:$8 sm:$0xf0]
        %v1129 = vor.u32 %v1127, %v1128
        %v1131 = vlaneseq
        %v1132 = vshrl.u32 %v1131, 7
        %v1133 = vsub.s32 0, %v1132
        %v1134 = vrot.slane %v1129, %v1133
        %v1135 = vlaneseq
        %v1136 = vshrl.u32 %v1135, 7
        %v1137 = vsub.s32 1, %v1136
        %v1138 = vrot.slane %v1129, %v1137
        %v1139 = vlaneseq
        %v1140 = vshrl.u32 %v1139, 7
        %v1141 = vsub.s32 2, %v1140
        %v1142 = vrot.slane %v1129, %v1141
        %v1143 = vlaneseq
        %v1144 = vshrl.u32 %v1143, 7
        %v1145 = vsub.s32 3, %v1144
        %v1146 = vrot.slane %v1129, %v1145
        %v1147 = vlaneseq
        %v1148 = vshrl.u32 %v1147, 7
        %v1149 = vsub.s32 4, %v1148
        %v1150 = vrot.slane %v1129, %v1149
        %v1151 = vlaneseq
        %v1152 = vshrl.u32 %v1151, 7
        %v1153 = vsub.s32 5, %v1152
        %v1154 = vrot.slane %v1129, %v1153
        %v1155 = vlaneseq
        %v1156 = vshrl.u32 %v1155, 7
        %v1157 = vsub.s32 6, %v1156
        %v1158 = vrot.slane %v1129, %v1157
        %v1159 = vlaneseq
        %v1160 = vshrl.u32 %v1159, 7
        %v1161 = vsub.s32 7, %v1160
        %v1162 = vrot.slane %v1129, %v1161
        %1163 = vrot.lane.b32.xlu0 %v316, 1
        %v1164 = vpop.permute.xlu0 %1163
        %1165 = vrot.lane.b32.xlu0 %v317, 1
        %v1166 = vpop.permute.xlu0 %1165
        %1167 = vrot.lane.b32.xlu0 %v318, 1
        %v1168 = vpop.permute.xlu0 %1167
        %1169 = vrot.lane.b32.xlu0 %v319, 1
        %v1170 = vpop.permute.xlu0 %1169
        %1171 = vrot.lane.b32.xlu0 %v320, 1
        %v1172 = vpop.permute.xlu0 %1171
        %v1173 = vrot.slane %v1164, 4
        %v1174 = vrot.slane %v1166, 4
        %v1175 = vrot.slane %v1168, 4
        %v1176 = vrot.slane %v1170, 4
        %v1177 = vrot.slane %v1172, 4
        %v1178 = vsel %vm523, %v1173, %v1174
        %v1179 = vsel %vm593, %v1178, %v1166
        %v1180 = vsel %vm523, %v1174, %v1175
        %v1181 = vsel %vm593, %v1180, %v1168
        %v1182 = vsel %vm523, %v1175, %v1176
        %v1183 = vsel %vm593, %v1182, %v1170
        %v1184 = vsel %vm523, %v1176, %v1177
        %v1185 = vsel %vm593, %v1184, %v1172
        %v1190 = vcombine.low %v1134, %v1138
        %v1191 = vcombine.low %v1142, %v1146
        %v1192 = vcombine.low %v1150, %v1154
        %v1193 = vcombine.low %v1158, %v1162
        %v1198 = vmul.f32 %v1179, %v1190
        %v1199 = vmul.f32 %v1181, %v1191
        %v1200 = vmul.f32 %v1183, %v1192
        %v1201 = vmul.f32 %v1185, %v1193
        %v1206 = vcombine.high %v1198, %v1198
        %v1207 = vcombine.high %v1199, %v1199
        %v1208 = vcombine.high %v1200, %v1200
        %v1209 = vcombine.high %v1201, %v1201
        %v1214 = vcombine.low %v317, %v317
        %v1215 = vcombine.low %v318, %v318
        %v1216 = vcombine.low %v319, %v319
        %v1217 = vcombine.low %v320, %v320
        %v1222 = vsel %vm523, %v1198, %v1214
        %v1223 = vsel %vm523, %v1206, %v317
        %v1224 = vsel %vm523, %v1199, %v1215
        %v1225 = vsel %vm523, %v1207, %v318
        %v1226 = vsel %vm523, %v1200, %v1216
        %v1227 = vsel %vm523, %v1208, %v319
        %v1228 = vsel %vm523, %v1201, %v1217
        %v1229 = vsel %vm523, %v1209, %v320
        %1230 = vst [vmem:[#allocation4 + $0x100] sm:$0xff] %v1222
        %1231 = vst [vmem:[#allocation4 + $0x108] sm:$0xff] %v1223
        %1232 = vst [vmem:[#allocation4 + $0x110] sm:$0xff] %v1224
        %1233 = vst [vmem:[#allocation4 + $0x118] sm:$0xff] %v1225
        %1234 = vst [vmem:[#allocation4 + $0x120] sm:$0xff] %v1226
        %1235 = vst [vmem:[#allocation4 + $0x128] sm:$0xff] %v1227
        %1236 = vst [vmem:[#allocation4 + $0x130] sm:$0xff] %v1228
        %1237 = vst [vmem:[#allocation4 + $0x138] sm:$0xff] %v1229
        %s1238 = scalar_lea.vmem [#allocation5], 66
        %v1239 = vld [vmem:[%s1238] ss:$8 sm:$0xf]
        %v1240 = vld [vmem:[%s1238] ss:$8 sm:$0xf0]
        %v1241 = vor.u32 %v1239, %v1240
        %v1243 = vlaneseq
        %v1244 = vshrl.u32 %v1243, 7
        %v1245 = vsub.s32 0, %v1244
        %v1246 = vrot.slane %v1241, %v1245
        %v1247 = vlaneseq
        %v1248 = vshrl.u32 %v1247, 7
        %v1249 = vsub.s32 1, %v1248
        %v1250 = vrot.slane %v1241, %v1249
        %v1251 = vlaneseq
        %v1252 = vshrl.u32 %v1251, 7
        %v1253 = vsub.s32 2, %v1252
        %v1254 = vrot.slane %v1241, %v1253
        %v1255 = vlaneseq
        %v1256 = vshrl.u32 %v1255, 7
        %v1257 = vsub.s32 3, %v1256
        %v1258 = vrot.slane %v1241, %v1257
        %v1259 = vlaneseq
        %v1260 = vshrl.u32 %v1259, 7
        %v1261 = vsub.s32 4, %v1260
        %v1262 = vrot.slane %v1241, %v1261
        %v1263 = vlaneseq
        %v1264 = vshrl.u32 %v1263, 7
        %v1265 = vsub.s32 5, %v1264
        %v1266 = vrot.slane %v1241, %v1265
        %v1267 = vlaneseq
        %v1268 = vshrl.u32 %v1267, 7
        %v1269 = vsub.s32 6, %v1268
        %v1270 = vrot.slane %v1241, %v1269
        %v1271 = vlaneseq
        %v1272 = vshrl.u32 %v1271, 7
        %v1273 = vsub.s32 7, %v1272
        %v1274 = vrot.slane %v1241, %v1273
        %v1275 = vcombine.low %v1246, %v1250
        %v1276 = vcombine.low %v1254, %v1258
        %v1277 = vcombine.low %v1262, %v1266
        %v1278 = vcombine.low %v1270, %v1274
        %1279 = vrot.lane.b32.xlu0 %v1275, 1
        %v1280 = vpop.permute.xlu0 %1279
        %1281 = vrot.lane.b32.xlu0 %v1276, 1
        %v1282 = vpop.permute.xlu0 %1281
        %1283 = vrot.lane.b32.xlu0 %v1277, 1
        %v1284 = vpop.permute.xlu0 %1283
        %1285 = vrot.lane.b32.xlu0 %v1278, 1
        %v1286 = vpop.permute.xlu0 %1285
        %v1287 = vrot.slane %v1280, 4
        %v1288 = vrot.slane %v1282, 4
        %v1289 = vrot.slane %v1284, 4
        %v1290 = vrot.slane %v1286, 4
        %v1291 = vsel %vm593, %v1287, %v1280
        %v1292 = vsel %vm523, %v1287, %v1288
        %v1293 = vsel %vm593, %v1292, %v1282
        %v1294 = vsel %vm523, %v1288, %v1289
        %v1295 = vsel %vm593, %v1294, %v1284
        %v1296 = vsel %vm523, %v1289, %v1290
        %v1297 = vsel %vm593, %v1296, %v1286
        %v1303 = vmul.f32 %v317, %v1291
        %v1304 = vmul.f32 %v318, %v1293
        %v1305 = vmul.f32 %v319, %v1295
        %v1306 = vmul.f32 %v320, %v1297
        %v1307 = vmul.f32 %v321, %v1290
        %s1308 = scalar_lea.vmem [#allocation5], 67
        %v1309 = vld [vmem:[%s1308] ss:$8 sm:$0xf]
        %v1310 = vld [vmem:[%s1308] ss:$8 sm:$0xf0]
        %v1311 = vor.u32 %v1309, %v1310
        %v1313 = vlaneseq
        %v1314 = vshrl.u32 %v1313, 7
        %v1315 = vsub.s32 0, %v1314
        %v1316 = vrot.slane %v1311, %v1315
        %v1317 = vlaneseq
        %v1318 = vshrl.u32 %v1317, 7
        %v1319 = vsub.s32 1, %v1318
        %v1320 = vrot.slane %v1311, %v1319
        %v1321 = vlaneseq
        %v1322 = vshrl.u32 %v1321, 7
        %v1323 = vsub.s32 2, %v1322
        %v1324 = vrot.slane %v1311, %v1323
        %v1325 = vlaneseq
        %v1326 = vshrl.u32 %v1325, 7
        %v1327 = vsub.s32 3, %v1326
        %v1328 = vrot.slane %v1311, %v1327
        %v1329 = vlaneseq
        %v1330 = vshrl.u32 %v1329, 7
        %v1331 = vsub.s32 4, %v1330
        %v1332 = vrot.slane %v1311, %v1331
        %v1333 = vlaneseq
        %v1334 = vshrl.u32 %v1333, 7
        %v1335 = vsub.s32 5, %v1334
        %v1336 = vrot.slane %v1311, %v1335
        %v1337 = vlaneseq
        %v1338 = vshrl.u32 %v1337, 7
        %v1339 = vsub.s32 6, %v1338
        %v1340 = vrot.slane %v1311, %v1339
        %v1341 = vlaneseq
        %v1342 = vshrl.u32 %v1341, 7
        %v1343 = vsub.s32 7, %v1342
        %v1344 = vrot.slane %v1311, %v1343
        %v1345 = vcombine.low %v1316, %v1320
        %v1346 = vcombine.low %v1324, %v1328
        %v1347 = vcombine.low %v1332, %v1336
        %v1348 = vcombine.low %v1340, %v1344
        %1349 = vrot.lane.b32.xlu0 %v1345, 15
        %v1350 = vpop.permute.xlu0 %1349
        %1351 = vrot.lane.b32.xlu0 %v1346, 15
        %v1352 = vpop.permute.xlu0 %1351
        %1353 = vrot.lane.b32.xlu0 %v1347, 15
        %v1354 = vpop.permute.xlu0 %1353
        %1355 = vrot.lane.b32.xlu0 %v1348, 15
        %v1356 = vpop.permute.xlu0 %1355
        %v1357 = vrot.slane %v1350, 4
        %v1358 = vrot.slane %v1352, 4
        %v1359 = vrot.slane %v1354, 4
        %v1360 = vrot.slane %v1356, 4
        %v1361 = vsel %vm1062, %v1357, %v1350
        %v1362 = vsel %vm523, %v1357, %v1358
        %v1363 = vsel %vm1062, %v1362, %v1352
        %v1364 = vsel %vm523, %v1358, %v1359
        %v1365 = vsel %vm1062, %v1364, %v1354
        %v1366 = vsel %vm523, %v1359, %v1360
        %v1367 = vsel %vm1062, %v1366, %v1356
        %v1373 = vmul.f32 %v317, %v1361
        %v1374 = vmul.f32 %v318, %v1363
        %v1375 = vmul.f32 %v319, %v1365
        %v1376 = vmul.f32 %v320, %v1367
        %v1377 = vmul.f32 %v321, %v1360
        %v1382 = vcombine.high %v1303, %v1303
        %v1383 = vcombine.high %v1304, %v1304
        %v1384 = vcombine.high %v1305, %v1305
        %v1385 = vcombine.high %v1306, %v1306
        %v1395 = vcombine.low %v1373, %v1373
        %v1396 = vcombine.low %v1374, %v1374
        %v1397 = vcombine.low %v1375, %v1375
        %v1398 = vcombine.low %v1376, %v1376
        %v1399 = vcombine.low %v1377, %v1377
        %1400 = vrot.lane.b32.xlu0 %v1395, 114
        %v1401 = vpop.permute.xlu0 %1400
        %1402 = vrot.lane.b32.xlu0 %v1373, 114
        %v1403 = vpop.permute.xlu0 %1402
        %1404 = vrot.lane.b32.xlu0 %v1396, 114
        %v1405 = vpop.permute.xlu0 %1404
        %1406 = vrot.lane.b32.xlu0 %v1374, 114
        %v1407 = vpop.permute.xlu0 %1406
        %1408 = vrot.lane.b32.xlu0 %v1397, 114
        %v1409 = vpop.permute.xlu0 %1408
        %1410 = vrot.lane.b32.xlu0 %v1375, 114
        %v1411 = vpop.permute.xlu0 %1410
        %1412 = vrot.lane.b32.xlu0 %v1398, 114
        %v1413 = vpop.permute.xlu0 %1412
        %1414 = vrot.lane.b32.xlu0 %v1376, 114
        %v1415 = vpop.permute.xlu0 %1414
        %1416 = vrot.lane.b32.xlu0 %v1399, 114
        %v1417 = vpop.permute.xlu0 %1416
        %vm1418 = vcmask 932864
        %v1419 = vsel %vm1418, %v1401, %v1403
        %v1420 = vsel %vm1418, %v1403, %v1405
        %v1421 = vsel %vm1418, %v1405, %v1407
        %v1422 = vsel %vm1418, %v1407, %v1409
        %v1423 = vsel %vm1418, %v1409, %v1411
        %v1424 = vsel %vm1418, %v1411, %v1413
        %v1425 = vsel %vm1418, %v1413, %v1415
        %v1426 = vsel %vm1418, %v1415, %v1417
        %v1436 = vsel %vm523, %v1303, %v1419
        %v1437 = vsel %vm523, %v1382, %v1420
        %v1438 = vsel %vm523, %v1304, %v1421
        %v1439 = vsel %vm523, %v1383, %v1422
        %v1440 = vsel %vm523, %v1305, %v1423
        %v1441 = vsel %vm523, %v1384, %v1424
        %v1442 = vsel %vm523, %v1306, %v1425
        %v1443 = vsel %vm523, %v1385, %v1426
        %v1444 = vsel %vm523, %v1307, %v1417
        %1454 = vrot.lane.b32.xlu0 %v1436, 127
        %v1455 = vpop.permute.xlu0 %1454
        %1456 = vrot.lane.b32.xlu0 %v1437, 127
        %v1457 = vpop.permute.xlu0 %1456
        %1458 = vrot.lane.b32.xlu0 %v1438, 127
        %v1459 = vpop.permute.xlu0 %1458
        %1460 = vrot.lane.b32.xlu0 %v1439, 127
        %v1461 = vpop.permute.xlu0 %1460
        %1462 = vrot.lane.b32.xlu0 %v1440, 127
        %v1463 = vpop.permute.xlu0 %1462
        %1464 = vrot.lane.b32.xlu0 %v1441, 127
        %v1465 = vpop.permute.xlu0 %1464
        %1466 = vrot.lane.b32.xlu0 %v1442, 127
        %v1467 = vpop.permute.xlu0 %1466
        %1468 = vrot.lane.b32.xlu0 %v1443, 127
        %v1469 = vpop.permute.xlu0 %1468
        %1470 = vrot.lane.b32.xlu0 %v1444, 127
        %v1471 = vpop.permute.xlu0 %1470
        %v1472 = vsel %vm639, %v1455, %v1457
        %v1473 = vsel %vm639, %v1457, %v1459
        %v1474 = vsel %vm639, %v1459, %v1461
        %v1475 = vsel %vm639, %v1461, %v1463
        %v1476 = vsel %vm639, %v1463, %v1465
        %v1477 = vsel %vm639, %v1465, %v1467
        %v1478 = vsel %vm639, %v1467, %v1469
        %v1479 = vsel %vm639, %v1469, %v1471
        %1488 = vst [vmem:[#allocation4 + $0x140] sm:$0xff] %v1472
        %1489 = vst [vmem:[#allocation4 + $0x148] sm:$0xff] %v1473
        %1490 = vst [vmem:[#allocation4 + $0x150] sm:$0xff] %v1474
        %1491 = vst [vmem:[#allocation4 + $0x158] sm:$0xff] %v1475
        %1492 = vst [vmem:[#allocation4 + $0x160] sm:$0xff] %v1476
        %1493 = vst [vmem:[#allocation4 + $0x168] sm:$0xff] %v1477
        %1494 = vst [vmem:[#allocation4 + $0x170] sm:$0xff] %v1478
        %1495 = vst [vmem:[#allocation4 + $0x178] sm:$0xff] %v1479
        %s1496 = scalar_lea.vmem [#allocation5], 68
        %v1497 = vld [vmem:[%s1496] ss:$8 sm:$0xf]
        %v1498 = vld [vmem:[%s1496] ss:$8 sm:$0xf0]
        %v1499 = vor.u32 %v1497, %v1498
        %v1501 = vlaneseq
        %v1502 = vshrl.u32 %v1501, 7
        %v1503 = vsub.s32 0, %v1502
        %v1504 = vrot.slane %v1499, %v1503
        %v1505 = vlaneseq
        %v1506 = vshrl.u32 %v1505, 7
        %v1507 = vsub.s32 1, %v1506
        %v1508 = vrot.slane %v1499, %v1507
        %v1509 = vlaneseq
        %v1510 = vshrl.u32 %v1509, 7
        %v1511 = vsub.s32 2, %v1510
        %v1512 = vrot.slane %v1499, %v1511
        %v1513 = vlaneseq
        %v1514 = vshrl.u32 %v1513, 7
        %v1515 = vsub.s32 3, %v1514
        %v1516 = vrot.slane %v1499, %v1515
        %v1517 = vlaneseq
        %v1518 = vshrl.u32 %v1517, 7
        %v1519 = vsub.s32 4, %v1518
        %v1520 = vrot.slane %v1499, %v1519
        %v1521 = vlaneseq
        %v1522 = vshrl.u32 %v1521, 7
        %v1523 = vsub.s32 5, %v1522
        %v1524 = vrot.slane %v1499, %v1523
        %v1525 = vlaneseq
        %v1526 = vshrl.u32 %v1525, 7
        %v1527 = vsub.s32 6, %v1526
        %v1528 = vrot.slane %v1499, %v1527
        %v1529 = vlaneseq
        %v1530 = vshrl.u32 %v1529, 7
        %v1531 = vsub.s32 7, %v1530
        %v1532 = vrot.slane %v1499, %v1531
        %v1533 = vcombine.low %v1504, %v1508
        %v1534 = vcombine.low %v1512, %v1516
        %v1535 = vcombine.low %v1520, %v1524
        %v1536 = vcombine.low %v1528, %v1532
        %1537 = vrot.lane.b32.xlu0 %v1533, 16
        %v1538 = vpop.permute.xlu0 %1537
        %1539 = vrot.lane.b32.xlu0 %v1534, 16
        %v1540 = vpop.permute.xlu0 %1539
        %1541 = vrot.lane.b32.xlu0 %v1535, 16
        %v1542 = vpop.permute.xlu0 %1541
        %1543 = vrot.lane.b32.xlu0 %v1536, 16
        %v1544 = vpop.permute.xlu0 %1543
        %v1545 = vrot.slane %v1538, 4
        %v1546 = vrot.slane %v1540, 4
        %v1547 = vrot.slane %v1542, 4
        %v1548 = vrot.slane %v1544, 4
        %v1549 = vsel %vm725, %v1545, %v1538
        %v1550 = vsel %vm523, %v1545, %v1546
        %v1551 = vsel %vm725, %v1550, %v1540
        %v1552 = vsel %vm523, %v1546, %v1547
        %v1553 = vsel %vm725, %v1552, %v1542
        %v1554 = vsel %vm523, %v1547, %v1548
        %v1555 = vsel %vm725, %v1554, %v1544
        %v1561 = vmul.f32 %v317, %v1549
        %v1562 = vmul.f32 %v318, %v1551
        %v1563 = vmul.f32 %v319, %v1553
        %v1564 = vmul.f32 %v320, %v1555
        %v1565 = vmul.f32 %v321, %v1548
        %s1566 = scalar_lea.vmem [#allocation5], 69
        %v1567 = vld [vmem:[%s1566] ss:$8 sm:$0xf]
        %v1568 = vld [vmem:[%s1566] ss:$8 sm:$0xf0]
        %v1569 = vor.u32 %v1567, %v1568
        %v1571 = vlaneseq
        %v1572 = vshrl.u32 %v1571, 7
        %v1573 = vsub.s32 0, %v1572
        %v1574 = vrot.slane %v1569, %v1573
        %v1575 = vlaneseq
        %v1576 = vshrl.u32 %v1575, 7
        %v1577 = vsub.s32 1, %v1576
        %v1578 = vrot.slane %v1569, %v1577
        %v1579 = vlaneseq
        %v1580 = vshrl.u32 %v1579, 7
        %v1581 = vsub.s32 2, %v1580
        %v1582 = vrot.slane %v1569, %v1581
        %v1583 = vlaneseq
        %v1584 = vshrl.u32 %v1583, 7
        %v1585 = vsub.s32 3, %v1584
        %v1586 = vrot.slane %v1569, %v1585
        %v1587 = vlaneseq
        %v1588 = vshrl.u32 %v1587, 7
        %v1589 = vsub.s32 4, %v1588
        %v1590 = vrot.slane %v1569, %v1589
        %v1591 = vlaneseq
        %v1592 = vshrl.u32 %v1591, 7
        %v1593 = vsub.s32 5, %v1592
        %v1594 = vrot.slane %v1569, %v1593
        %v1595 = vlaneseq
        %v1596 = vshrl.u32 %v1595, 7
        %v1597 = vsub.s32 6, %v1596
        %v1598 = vrot.slane %v1569, %v1597
        %v1599 = vlaneseq
        %v1600 = vshrl.u32 %v1599, 7
        %v1601 = vsub.s32 7, %v1600
        %v1602 = vrot.slane %v1569, %v1601
        %v1603 = vcombine.low %v1574, %v1578
        %v1604 = vcombine.low %v1582, %v1586
        %v1605 = vcombine.low %v1590, %v1594
        %v1606 = vcombine.low %v1598, %v1602
        %1607 = vrot.lane.b32.xlu0 %v1603, 17
        %v1608 = vpop.permute.xlu0 %1607
        %1609 = vrot.lane.b32.xlu0 %v1604, 17
        %v1610 = vpop.permute.xlu0 %1609
        %1611 = vrot.lane.b32.xlu0 %v1605, 17
        %v1612 = vpop.permute.xlu0 %1611
        %1613 = vrot.lane.b32.xlu0 %v1606, 17
        %v1614 = vpop.permute.xlu0 %1613
        %v1615 = vrot.slane %v1608, 4
        %v1616 = vrot.slane %v1610, 4
        %v1617 = vrot.slane %v1612, 4
        %v1618 = vrot.slane %v1614, 4
        %v1619 = vsel %vm796, %v1615, %v1608
        %v1620 = vsel %vm523, %v1615, %v1616
        %v1621 = vsel %vm796, %v1620, %v1610
        %v1622 = vsel %vm523, %v1616, %v1617
        %v1623 = vsel %vm796, %v1622, %v1612
        %v1624 = vsel %vm523, %v1617, %v1618
        %v1625 = vsel %vm796, %v1624, %v1614
        %v1631 = vmul.f32 %v317, %v1619
        %v1632 = vmul.f32 %v318, %v1621
        %v1633 = vmul.f32 %v319, %v1623
        %v1634 = vmul.f32 %v320, %v1625
        %v1635 = vmul.f32 %v321, %v1618
        %v1640 = vcombine.high %v1561, %v1561
        %v1641 = vcombine.high %v1562, %v1562
        %v1642 = vcombine.high %v1563, %v1563
        %v1643 = vcombine.high %v1564, %v1564
        %v1653 = vcombine.low %v1631, %v1631
        %v1654 = vcombine.low %v1632, %v1632
        %v1655 = vcombine.low %v1633, %v1633
        %v1656 = vcombine.low %v1634, %v1634
        %v1657 = vcombine.low %v1635, %v1635
        %1658 = vrot.lane.b32.xlu0 %v1653, 127
        %v1659 = vpop.permute.xlu0 %1658
        %1660 = vrot.lane.b32.xlu0 %v1631, 127
        %v1661 = vpop.permute.xlu0 %1660
        %1662 = vrot.lane.b32.xlu0 %v1654, 127
        %v1663 = vpop.permute.xlu0 %1662
        %1664 = vrot.lane.b32.xlu0 %v1632, 127
        %v1665 = vpop.permute.xlu0 %1664
        %1666 = vrot.lane.b32.xlu0 %v1655, 127
        %v1667 = vpop.permute.xlu0 %1666
        %1668 = vrot.lane.b32.xlu0 %v1633, 127
        %v1669 = vpop.permute.xlu0 %1668
        %1670 = vrot.lane.b32.xlu0 %v1656, 127
        %v1671 = vpop.permute.xlu0 %1670
        %1672 = vrot.lane.b32.xlu0 %v1634, 127
        %v1673 = vpop.permute.xlu0 %1672
        %1674 = vrot.lane.b32.xlu0 %v1657, 127
        %v1675 = vpop.permute.xlu0 %1674
        %v1676 = vsel %vm639, %v1659, %v1661
        %v1677 = vsel %vm639, %v1661, %v1663
        %v1678 = vsel %vm639, %v1663, %v1665
        %v1679 = vsel %vm639, %v1665, %v1667
        %v1680 = vsel %vm639, %v1667, %v1669
        %v1681 = vsel %vm639, %v1669, %v1671
        %v1682 = vsel %vm639, %v1671, %v1673
        %v1683 = vsel %vm639, %v1673, %v1675
        %v1693 = vsel %vm523, %v1561, %v1676
        %v1694 = vsel %vm523, %v1640, %v1677
        %v1695 = vsel %vm523, %v1562, %v1678
        %v1696 = vsel %vm523, %v1641, %v1679
        %v1697 = vsel %vm523, %v1563, %v1680
        %v1698 = vsel %vm523, %v1642, %v1681
        %v1699 = vsel %vm523, %v1564, %v1682
        %v1700 = vsel %vm523, %v1643, %v1683
        %v1701 = vsel %vm523, %v1565, %v1675
        %1711 = vrot.lane.b32.xlu0 %v1693, 112
        %v1712 = vpop.permute.xlu0 %1711
        %1713 = vrot.lane.b32.xlu0 %v1694, 112
        %v1714 = vpop.permute.xlu0 %1713
        %1715 = vrot.lane.b32.xlu0 %v1695, 112
        %v1716 = vpop.permute.xlu0 %1715
        %1717 = vrot.lane.b32.xlu0 %v1696, 112
        %v1718 = vpop.permute.xlu0 %1717
        %1719 = vrot.lane.b32.xlu0 %v1697, 112
        %v1720 = vpop.permute.xlu0 %1719
        %1721 = vrot.lane.b32.xlu0 %v1698, 112
        %v1722 = vpop.permute.xlu0 %1721
        %1723 = vrot.lane.b32.xlu0 %v1699, 112
        %v1724 = vpop.permute.xlu0 %1723
        %1725 = vrot.lane.b32.xlu0 %v1700, 112
        %v1726 = vpop.permute.xlu0 %1725
        %1727 = vrot.lane.b32.xlu0 %v1701, 112
        %v1728 = vpop.permute.xlu0 %1727
        %v1729 = vsel %vm908, %v1712, %v1714
        %v1730 = vsel %vm908, %v1714, %v1716
        %v1731 = vsel %vm908, %v1716, %v1718
        %v1732 = vsel %vm908, %v1718, %v1720
        %v1733 = vsel %vm908, %v1720, %v1722
        %v1734 = vsel %vm908, %v1722, %v1724
        %v1735 = vsel %vm908, %v1724, %v1726
        %v1736 = vsel %vm908, %v1726, %v1728
        %1745 = vst [vmem:[#allocation4 + $0x180] sm:$0xff] %v1729
        %1746 = vst [vmem:[#allocation4 + $0x188] sm:$0xff] %v1730
        %1747 = vst [vmem:[#allocation4 + $0x190] sm:$0xff] %v1731
        %1748 = vst [vmem:[#allocation4 + $0x198] sm:$0xff] %v1732
        %1749 = vst [vmem:[#allocation4 + $0x1a0] sm:$0xff] %v1733
        %1750 = vst [vmem:[#allocation4 + $0x1a8] sm:$0xff] %v1734
        %1751 = vst [vmem:[#allocation4 + $0x1b0] sm:$0xff] %v1735
        %1752 = vst [vmem:[#allocation4 + $0x1b8] sm:$0xff] %v1736
        %s1753 = scalar_lea.vmem [#allocation5], 70
        %v1754 = vld [vmem:[%s1753] ss:$8 sm:$0xf]
        %v1755 = vld [vmem:[%s1753] ss:$8 sm:$0xf0]
        %v1756 = vor.u32 %v1754, %v1755
        %v1758 = vlaneseq
        %v1759 = vshrl.u32 %v1758, 7
        %v1760 = vsub.s32 0, %v1759
        %v1761 = vrot.slane %v1756, %v1760
        %v1762 = vlaneseq
        %v1763 = vshrl.u32 %v1762, 7
        %v1764 = vsub.s32 1, %v1763
        %v1765 = vrot.slane %v1756, %v1764
        %v1766 = vlaneseq
        %v1767 = vshrl.u32 %v1766, 7
        %v1768 = vsub.s32 2, %v1767
        %v1769 = vrot.slane %v1756, %v1768
        %v1770 = vlaneseq
        %v1771 = vshrl.u32 %v1770, 7
        %v1772 = vsub.s32 3, %v1771
        %v1773 = vrot.slane %v1756, %v1772
        %v1774 = vlaneseq
        %v1775 = vshrl.u32 %v1774, 7
        %v1776 = vsub.s32 4, %v1775
        %v1777 = vrot.slane %v1756, %v1776
        %v1778 = vlaneseq
        %v1779 = vshrl.u32 %v1778, 7
        %v1780 = vsub.s32 5, %v1779
        %v1781 = vrot.slane %v1756, %v1780
        %v1782 = vlaneseq
        %v1783 = vshrl.u32 %v1782, 7
        %v1784 = vsub.s32 6, %v1783
        %v1785 = vrot.slane %v1756, %v1784
        %v1786 = vlaneseq
        %v1787 = vshrl.u32 %v1786, 7
        %v1788 = vsub.s32 7, %v1787
        %v1789 = vrot.slane %v1756, %v1788
        %1790 = vrot.lane.b32.xlu0 %v321, 16
        %v1791 = vpop.permute.xlu0 %1790
        %v1792 = vrot.slane %v1791, 4
        %v1793 = vsel %vm523, %v984, %v1792
        %v1794 = vsel %vm725, %v1793, %v1791
        %v1796 = vcombine.low %v1761, %v1765
        %v1797 = vcombine.low %v1769, %v1773
        %v1798 = vcombine.low %v1777, %v1781
        %v1799 = vcombine.low %v1785, %v1789
        %v1804 = vmul.f32 %v988, %v1796
        %v1805 = vmul.f32 %v990, %v1797
        %v1806 = vmul.f32 %v992, %v1798
        %v1807 = vmul.f32 %v1794, %v1799
        %s1808 = scalar_lea.vmem [#allocation5], 71
        %v1809 = vld [vmem:[%s1808] ss:$8 sm:$0xf]
        %v1810 = vld [vmem:[%s1808] ss:$8 sm:$0xf0]
        %v1811 = vor.u32 %v1809, %v1810
        %v1813 = vlaneseq
        %v1814 = vshrl.u32 %v1813, 7
        %v1815 = vsub.s32 0, %v1814
        %v1816 = vrot.slane %v1811, %v1815
        %v1817 = vlaneseq
        %v1818 = vshrl.u32 %v1817, 7
        %v1819 = vsub.s32 1, %v1818
        %v1820 = vrot.slane %v1811, %v1819
        %v1821 = vlaneseq
        %v1822 = vshrl.u32 %v1821, 7
        %v1823 = vsub.s32 2, %v1822
        %v1824 = vrot.slane %v1811, %v1823
        %v1825 = vlaneseq
        %v1826 = vshrl.u32 %v1825, 7
        %v1827 = vsub.s32 3, %v1826
        %v1828 = vrot.slane %v1811, %v1827
        %v1829 = vlaneseq
        %v1830 = vshrl.u32 %v1829, 7
        %v1831 = vsub.s32 4, %v1830
        %v1832 = vrot.slane %v1811, %v1831
        %v1833 = vlaneseq
        %v1834 = vshrl.u32 %v1833, 7
        %v1835 = vsub.s32 5, %v1834
        %v1836 = vrot.slane %v1811, %v1835
        %v1837 = vlaneseq
        %v1838 = vshrl.u32 %v1837, 7
        %v1839 = vsub.s32 6, %v1838
        %v1840 = vrot.slane %v1811, %v1839
        %v1841 = vlaneseq
        %v1842 = vshrl.u32 %v1841, 7
        %v1843 = vsub.s32 7, %v1842
        %v1844 = vrot.slane %v1811, %v1843
        %1845 = vrot.lane.b32.xlu0 %v321, 1
        %v1846 = vpop.permute.xlu0 %1845
        %v1847 = vrot.slane %v1846, 4
        %v1848 = vsel %vm523, %v1177, %v1847
        %v1849 = vsel %vm593, %v1848, %v1846
        %v1851 = vcombine.low %v1816, %v1820
        %v1852 = vcombine.low %v1824, %v1828
        %v1853 = vcombine.low %v1832, %v1836
        %v1854 = vcombine.low %v1840, %v1844
        %v1859 = vmul.f32 %v1181, %v1851
        %v1860 = vmul.f32 %v1183, %v1852
        %v1861 = vmul.f32 %v1185, %v1853
        %v1862 = vmul.f32 %v1849, %v1854
        %v1867 = vcombine.high %v1804, %v1804
        %v1868 = vcombine.high %v1805, %v1805
        %v1869 = vcombine.high %v1806, %v1806
        %v1870 = vcombine.high %v1807, %v1807
        %v1879 = vcombine.low %v1859, %v1859
        %v1880 = vcombine.low %v1860, %v1860
        %v1881 = vcombine.low %v1861, %v1861
        %v1882 = vcombine.low %v1862, %v1862
        %v1887 = vsel %vm523, %v1804, %v1879
        %v1888 = vsel %vm523, %v1867, %v1859
        %v1889 = vsel %vm523, %v1805, %v1880
        %v1890 = vsel %vm523, %v1868, %v1860
        %v1891 = vsel %vm523, %v1806, %v1881
        %v1892 = vsel %vm523, %v1869, %v1861
        %v1893 = vsel %vm523, %v1807, %v1882
        %v1894 = vsel %vm523, %v1870, %v1862
        %1895 = vst [vmem:[#allocation4 + $0x1c0] sm:$0xff] %v1887
        %1896 = vst [vmem:[#allocation4 + $0x1c8] sm:$0xff] %v1888
        %1897 = vst [vmem:[#allocation4 + $0x1d0] sm:$0xff] %v1889
        %1898 = vst [vmem:[#allocation4 + $0x1d8] sm:$0xff] %v1890
        %1899 = vst [vmem:[#allocation4 + $0x1e0] sm:$0xff] %v1891
        %1900 = vst [vmem:[#allocation4 + $0x1e8] sm:$0xff] %v1892
        %1901 = vst [vmem:[#allocation4 + $0x1f0] sm:$0xff] %v1893
        %1902 = vst [vmem:[#allocation4 + $0x1f8] sm:$0xff] %v1894
        %v1903 = vcombine.high %v320, %v320
        %1905 = vrot.lane.b32.xlu0 %v316, 127
        %v1906 = vpop.permute.xlu0 %1905
        %1907 = vrot.lane.b32.xlu0 %v318, 127
        %v1908 = vpop.permute.xlu0 %1907
        %1909 = vrot.lane.b32.xlu0 %v330, 127
        %v1910 = vpop.permute.xlu0 %1909
        %1911 = vrot.lane.b32.xlu0 %v319, 127
        %v1912 = vpop.permute.xlu0 %1911
        %1913 = vrot.lane.b32.xlu0 %v331, 127
        %v1914 = vpop.permute.xlu0 %1913
        %1915 = vrot.lane.b32.xlu0 %v320, 127
        %v1916 = vpop.permute.xlu0 %1915
        %1917 = vrot.lane.b32.xlu0 %v1903, 127
        %v1918 = vpop.permute.xlu0 %1917
        %1919 = vrot.lane.b32.xlu0 %v321, 127
        %v1920 = vpop.permute.xlu0 %1919
        %1921 = vrot.lane.b32.xlu0 %v332, 127
        %v1922 = vpop.permute.xlu0 %1921
        %vm1923 = vcmp.lt.s32.totalorder %v357, 127
        %v1924 = vsel %vm1923, %v1920, %v1922
        %v1925 = vsel %vm1923, %v1918, %v1920
        %v1926 = vsel %vm1923, %v1916, %v1918
        %v1927 = vsel %vm1923, %v1914, %v1916
        %v1928 = vsel %vm1923, %v1912, %v1914
        %v1929 = vsel %vm1923, %v1910, %v1912
        %v1930 = vsel %vm1923, %v1908, %v1910
        %v1931 = vsel %vm1923, %v1922, %v1906
        %s1932 = scalar_lea.vmem [#allocation5], 129
        %v1933 = vld [vmem:[%s1932] ss:$8 sm:$0xf]
        %v1934 = vld [vmem:[%s1932] ss:$8 sm:$0xf0]
        %v1935 = vor.u32 %v1933, %v1934
        %v1937 = vlaneseq
        %v1938 = vshrl.u32 %v1937, 7
        %v1939 = vsub.s32 0, %v1938
        %v1940 = vrot.slane %v1935, %v1939
        %v1941 = vlaneseq
        %v1942 = vshrl.u32 %v1941, 7
        %v1943 = vsub.s32 1, %v1942
        %v1944 = vrot.slane %v1935, %v1943
        %v1945 = vlaneseq
        %v1946 = vshrl.u32 %v1945, 7
        %v1947 = vsub.s32 2, %v1946
        %v1948 = vrot.slane %v1935, %v1947
        %v1949 = vlaneseq
        %v1950 = vshrl.u32 %v1949, 7
        %v1951 = vsub.s32 3, %v1950
        %v1952 = vrot.slane %v1935, %v1951
        %v1953 = vlaneseq
        %v1954 = vshrl.u32 %v1953, 7
        %v1955 = vsub.s32 4, %v1954
        %v1956 = vrot.slane %v1935, %v1955
        %v1957 = vlaneseq
        %v1958 = vshrl.u32 %v1957, 7
        %v1959 = vsub.s32 5, %v1958
        %v1960 = vrot.slane %v1935, %v1959
        %v1961 = vlaneseq
        %v1962 = vshrl.u32 %v1961, 7
        %v1963 = vsub.s32 6, %v1962
        %v1964 = vrot.slane %v1935, %v1963
        %v1965 = vlaneseq
        %v1966 = vshrl.u32 %v1965, 7
        %v1967 = vsub.s32 7, %v1966
        %v1968 = vrot.slane %v1935, %v1967
        %v1977 = vmul.f32 %v1930, %v1940
        %v1978 = vmul.f32 %v1929, %v1944
        %v1979 = vmul.f32 %v1928, %v1948
        %v1980 = vmul.f32 %v1927, %v1952
        %v1981 = vmul.f32 %v1926, %v1956
        %v1982 = vmul.f32 %v1925, %v1960
        %v1983 = vmul.f32 %v1924, %v1964
        %v1984 = vmul.f32 %v1931, %v1968
        %v1993 = vrot.slane %v1977, 4
        %v1994 = vrot.slane %v1978, 4
        %v1995 = vrot.slane %v1979, 4
        %v1996 = vrot.slane %v1980, 4
        %v1997 = vrot.slane %v1981, 4
        %v1998 = vrot.slane %v1982, 4
        %v1999 = vrot.slane %v1983, 4
        %v2000 = vrot.slane %v1984, 4
        %v2009 = vsel %vm523, %v318, %v1993
        %v2010 = vsel %vm523, %v330, %v1994
        %v2011 = vsel %vm523, %v319, %v1995
        %v2012 = vsel %vm523, %v331, %v1996
        %v2013 = vsel %vm523, %v320, %v1997
        %v2014 = vsel %vm523, %v1903, %v1998
        %v2015 = vsel %vm523, %v321, %v1999
        %v2016 = vsel %vm523, %v332, %v2000
        %2017 = vst [vmem:[#allocation4 + $0x200] sm:$0xff] %v2009
        %2018 = vst [vmem:[#allocation4 + $0x208] sm:$0xff] %v2010
        %2019 = vst [vmem:[#allocation4 + $0x210] sm:$0xff] %v2011
        %2020 = vst [vmem:[#allocation4 + $0x218] sm:$0xff] %v2012
        %2021 = vst [vmem:[#allocation4 + $0x220] sm:$0xff] %v2013
        %2022 = vst [vmem:[#allocation4 + $0x228] sm:$0xff] %v2014
        %2023 = vst [vmem:[#allocation4 + $0x230] sm:$0xff] %v2015
        %2024 = vst [vmem:[#allocation4 + $0x238] sm:$0xff] %v2016
        %2025 = vrot.lane.b32.xlu0 %v316, 112
        %v2026 = vpop.permute.xlu0 %2025
        %2027 = vrot.lane.b32.xlu0 %v318, 112
        %v2028 = vpop.permute.xlu0 %2027
        %2029 = vrot.lane.b32.xlu0 %v330, 112
        %v2030 = vpop.permute.xlu0 %2029
        %2031 = vrot.lane.b32.xlu0 %v319, 112
        %v2032 = vpop.permute.xlu0 %2031
        %2033 = vrot.lane.b32.xlu0 %v331, 112
        %v2034 = vpop.permute.xlu0 %2033
        %2035 = vrot.lane.b32.xlu0 %v320, 112
        %v2036 = vpop.permute.xlu0 %2035
        %2037 = vrot.lane.b32.xlu0 %v1903, 112
        %v2038 = vpop.permute.xlu0 %2037
        %2039 = vrot.lane.b32.xlu0 %v321, 112
        %v2040 = vpop.permute.xlu0 %2039
        %2041 = vrot.lane.b32.xlu0 %v332, 112
        %v2042 = vpop.permute.xlu0 %2041
        %vm2043 = vcmp.lt.s32.totalorder %v357, 112
        %v2044 = vsel %vm2043, %v2040, %v2042
        %v2045 = vsel %vm2043, %v2038, %v2040
        %v2046 = vsel %vm2043, %v2036, %v2038
        %v2047 = vsel %vm2043, %v2034, %v2036
        %v2048 = vsel %vm2043, %v2032, %v2034
        %v2049 = vsel %vm2043, %v2030, %v2032
        %v2050 = vsel %vm2043, %v2028, %v2030
        %v2051 = vsel %vm2043, %v2042, %v2026
        %s2052 = scalar_lea.vmem [#allocation5], 130
        %v2053 = vld [vmem:[%s2052] ss:$8 sm:$0xf]
        %v2054 = vld [vmem:[%s2052] ss:$8 sm:$0xf0]
        %v2055 = vor.u32 %v2053, %v2054
        %v2057 = vlaneseq
        %v2058 = vshrl.u32 %v2057, 7
        %v2059 = vsub.s32 0, %v2058
        %v2060 = vrot.slane %v2055, %v2059
        %v2061 = vlaneseq
        %v2062 = vshrl.u32 %v2061, 7
        %v2063 = vsub.s32 1, %v2062
        %v2064 = vrot.slane %v2055, %v2063
        %v2065 = vlaneseq
        %v2066 = vshrl.u32 %v2065, 7
        %v2067 = vsub.s32 2, %v2066
        %v2068 = vrot.slane %v2055, %v2067
        %v2069 = vlaneseq
        %v2070 = vshrl.u32 %v2069, 7
        %v2071 = vsub.s32 3, %v2070
        %v2072 = vrot.slane %v2055, %v2071
        %v2073 = vlaneseq
        %v2074 = vshrl.u32 %v2073, 7
        %v2075 = vsub.s32 4, %v2074
        %v2076 = vrot.slane %v2055, %v2075
        %v2077 = vlaneseq
        %v2078 = vshrl.u32 %v2077, 7
        %v2079 = vsub.s32 5, %v2078
        %v2080 = vrot.slane %v2055, %v2079
        %v2081 = vlaneseq
        %v2082 = vshrl.u32 %v2081, 7
        %v2083 = vsub.s32 6, %v2082
        %v2084 = vrot.slane %v2055, %v2083
        %v2085 = vlaneseq
        %v2086 = vshrl.u32 %v2085, 7
        %v2087 = vsub.s32 7, %v2086
        %v2088 = vrot.slane %v2055, %v2087
        %v2097 = vmul.f32 %v2050, %v2060
        %v2098 = vmul.f32 %v2049, %v2064
        %v2099 = vmul.f32 %v2048, %v2068
        %v2100 = vmul.f32 %v2047, %v2072
        %v2101 = vmul.f32 %v2046, %v2076
        %v2102 = vmul.f32 %v2045, %v2080
        %v2103 = vmul.f32 %v2044, %v2084
        %v2104 = vmul.f32 %v2051, %v2088
        %v2105 = vsel %vm523, %v2097, 0.0
        %v2106 = vsel %vm523, %v2098, 0.0
        %v2107 = vsel %vm523, %v2099, 0.0
        %v2108 = vsel %vm523, %v2100, 0.0
        %v2109 = vsel %vm523, %v2101, 0.0
        %v2110 = vsel %vm523, %v2102, 0.0
        %v2111 = vsel %vm523, %v2103, 0.0
        %v2112 = vsel %vm523, %v2104, 0.0
        %2113 = vst [vmem:[#allocation4 + $0x240] sm:$0xff] %v2105
        %2114 = vst [vmem:[#allocation4 + $0x248] sm:$0xff] %v2106
        %2115 = vst [vmem:[#allocation4 + $0x250] sm:$0xff] %v2107
        %2116 = vst [vmem:[#allocation4 + $0x258] sm:$0xff] %v2108
        %2117 = vst [vmem:[#allocation4 + $0x260] sm:$0xff] %v2109
        %2118 = vst [vmem:[#allocation4 + $0x268] sm:$0xff] %v2110
        %2119 = vst [vmem:[#allocation4 + $0x270] sm:$0xff] %v2111
        %2120 = vst [vmem:[#allocation4 + $0x278] sm:$0xff] %v2112
        %v2121 = vld [vmem:[%s1] sm:$0xff]
        %v2122 = vld [vmem:[#allocation4] sm:$0xff]
        %v2123 = vld [vmem:[#allocation4 + $0x8] sm:$0xff]
        %v2124 = vld [vmem:[#allocation4 + $0x10] sm:$0xff]
        %v2125 = vld [vmem:[#allocation4 + $0x18] sm:$0xff]
        %v2126 = vld [vmem:[#allocation4 + $0x20] sm:$0xff]
        %v2127 = vld [vmem:[#allocation4 + $0x28] sm:$0xff]
        %v2128 = vld [vmem:[#allocation4 + $0x30] sm:$0xff]
        %v2129 = vld [vmem:[#allocation4 + $0x38] sm:$0xff]
        %v2130 = vld [vmem:[#allocation4 + $0x40] sm:$0xff]
        %v2131 = vld [vmem:[#allocation4 + $0x48] sm:$0xff]
        %v2132 = vld [vmem:[#allocation4 + $0x50] sm:$0xff]
        %v2133 = vld [vmem:[#allocation4 + $0x58] sm:$0xff]
        %v2134 = vld [vmem:[#allocation4 + $0x60] sm:$0xff]
        %v2135 = vld [vmem:[#allocation4 + $0x68] sm:$0xff]
        %v2136 = vld [vmem:[#allocation4 + $0x70] sm:$0xff]
        %v2137 = vld [vmem:[#allocation4 + $0x78] sm:$0xff]
        %v2138 = vld [vmem:[#allocation4 + $0x80] sm:$0xff]
        %v2139 = vld [vmem:[#allocation4 + $0x88] sm:$0xff]
        %v2140 = vld [vmem:[#allocation4 + $0x90] sm:$0xff]
        %v2141 = vld [vmem:[#allocation4 + $0x98] sm:$0xff]
        %v2142 = vld [vmem:[#allocation4 + $0xa0] sm:$0xff]
        %v2143 = vld [vmem:[#allocation4 + $0xa8] sm:$0xff]
        %v2144 = vld [vmem:[#allocation4 + $0xb0] sm:$0xff]
        %v2145 = vld [vmem:[#allocation4 + $0xb8] sm:$0xff]
        %v2146 = vld [vmem:[#allocation4 + $0xc0] sm:$0xff]
        %v2147 = vld [vmem:[#allocation4 + $0xc8] sm:$0xff]
        %v2148 = vld [vmem:[#allocation4 + $0xd0] sm:$0xff]
        %v2149 = vld [vmem:[#allocation4 + $0xd8] sm:$0xff]
        %v2150 = vld [vmem:[#allocation4 + $0xe0] sm:$0xff]
        %v2151 = vld [vmem:[#allocation4 + $0xe8] sm:$0xff]
        %v2152 = vld [vmem:[#allocation4 + $0xf0] sm:$0xff]
        %v2153 = vld [vmem:[#allocation4 + $0xf8] sm:$0xff]
        %v2154 = vld [vmem:[#allocation4 + $0x100] sm:$0xff]
        %v2155 = vld [vmem:[#allocation4 + $0x108] sm:$0xff]
        %v2156 = vld [vmem:[#allocation4 + $0x110] sm:$0xff]
        %v2157 = vld [vmem:[#allocation4 + $0x118] sm:$0xff]
        %v2158 = vld [vmem:[#allocation4 + $0x120] sm:$0xff]
        %v2159 = vld [vmem:[#allocation4 + $0x128] sm:$0xff]
        %v2160 = vld [vmem:[#allocation4 + $0x130] sm:$0xff]
        %v2161 = vld [vmem:[#allocation4 + $0x138] sm:$0xff]
        %v2162 = vld [vmem:[#allocation4 + $0x140] sm:$0xff]
        %v2163 = vld [vmem:[#allocation4 + $0x148] sm:$0xff]
        %v2164 = vld [vmem:[#allocation4 + $0x150] sm:$0xff]
        %v2165 = vld [vmem:[#allocation4 + $0x158] sm:$0xff]
        %v2166 = vld [vmem:[#allocation4 + $0x160] sm:$0xff]
        %v2167 = vld [vmem:[#allocation4 + $0x168] sm:$0xff]
        %v2168 = vld [vmem:[#allocation4 + $0x170] sm:$0xff]
        %v2169 = vld [vmem:[#allocation4 + $0x178] sm:$0xff]
        %v2170 = vld [vmem:[#allocation4 + $0x180] sm:$0xff]
        %v2171 = vld [vmem:[#allocation4 + $0x188] sm:$0xff]
        %v2172 = vld [vmem:[#allocation4 + $0x190] sm:$0xff]
        %v2173 = vld [vmem:[#allocation4 + $0x198] sm:$0xff]
        %v2174 = vld [vmem:[#allocation4 + $0x1a0] sm:$0xff]
        %v2175 = vld [vmem:[#allocation4 + $0x1a8] sm:$0xff]
        %v2176 = vld [vmem:[#allocation4 + $0x1b0] sm:$0xff]
        %v2177 = vld [vmem:[#allocation4 + $0x1b8] sm:$0xff]
        %v2178 = vld [vmem:[#allocation4 + $0x1c0] sm:$0xff]
        %v2179 = vld [vmem:[#allocation4 + $0x1c8] sm:$0xff]
        %v2180 = vld [vmem:[#allocation4 + $0x1d0] sm:$0xff]
        %v2181 = vld [vmem:[#allocation4 + $0x1d8] sm:$0xff]
        %v2182 = vld [vmem:[#allocation4 + $0x1e0] sm:$0xff]
        %v2183 = vld [vmem:[#allocation4 + $0x1e8] sm:$0xff]
        %v2184 = vld [vmem:[#allocation4 + $0x1f0] sm:$0xff]
        %v2185 = vld [vmem:[#allocation4 + $0x1f8] sm:$0xff]
        %v2186 = vld [vmem:[#allocation4 + $0x200] sm:$0xff]
        %v2187 = vld [vmem:[#allocation4 + $0x208] sm:$0xff]
        %v2188 = vld [vmem:[#allocation4 + $0x210] sm:$0xff]
        %v2189 = vld [vmem:[#allocation4 + $0x218] sm:$0xff]
        %v2190 = vld [vmem:[#allocation4 + $0x220] sm:$0xff]
        %v2191 = vld [vmem:[#allocation4 + $0x228] sm:$0xff]
        %v2192 = vld [vmem:[#allocation4 + $0x230] sm:$0xff]
        %v2193 = vld [vmem:[#allocation4 + $0x238] sm:$0xff]
        %v2194 = vld [vmem:[#allocation4 + $0x240] sm:$0xff]
        %v2195 = vld [vmem:[#allocation4 + $0x248] sm:$0xff]
        %v2196 = vld [vmem:[#allocation4 + $0x250] sm:$0xff]
        %v2197 = vld [vmem:[#allocation4 + $0x258] sm:$0xff]
        %v2198 = vld [vmem:[#allocation4 + $0x260] sm:$0xff]
        %v2199 = vld [vmem:[#allocation4 + $0x268] sm:$0xff]
        %v2200 = vld [vmem:[#allocation4 + $0x270] sm:$0xff]
        %v2201 = vld [vmem:[#allocation4 + $0x278] sm:$0xff]
        %v2202 = vld [vmem:[%s2] sm:$0xff]
        %2204 = vset.pattern.permute.xlu0 0
        %2205 = vperm.xlu0 %2204, %v2202
        %v2206 = vpop.permute.xlu0 %2205
        %vm2208 = vcmask 654336
        %v2210 = vsel %vm2208, %v2121, 0
        %2212 = vmatprep.subr.mxu0 %v2123
        %2213 = vmatpush1.msra.mxu0 %v2122
        %2214 = vmatprep.subr.mxu0 %v2131
        %2215 = vmatpush1.msra.mxu0 %v2130
        %2216 = vmatprep.subr.mxu0 %v2139
        %2217 = vmatpush1.msra.mxu0 %v2138
        %2218 = vmatprep.subr.mxu0 %v2147
        %2219 = vmatpush1.msra.mxu0 %v2146
        %2220 = vmatprep.subr.mxu0 %v2155
        %2221 = vmatpush1.msra.mxu0 %v2154
        %2222 = vmatprep.subr.mxu0 %v2163
        %2223 = vmatpush1.msra.mxu0 %v2162
        %2224 = vmatprep.subr.mxu0 %v2171
        %2225 = vmatpush1.msra.mxu0 %v2170
        %2226 = vmatprep.subr.mxu0 %v2179
        %2227 = vmatpush1.msra.mxu0 %v2178
        %2228 = vmatprep.subr.mxu0 %v2187
        %2229 = vmatpush1.msra.mxu0 %v2186
        %2230 = vmatprep.subr.mxu0 %v2195
        %2231 = vmatpush1.msra.mxu0 %v2194
        %2232 = vmatprep.subr.mxu0 0.0
        %2233 = vmatpush1.msra.mxu0 0.0
        %2234 = vmatprep.subr.mxu0 0.0
        %2235 = vmatpush1.msra.mxu0 0.0
        %2236 = vmatprep.subr.mxu0 0.0
        %2237 = vmatpush1.msra.mxu0 0.0
        %2238 = vmatprep.subr.mxu0 0.0
        %2239 = vmatpush1.msra.mxu0 0.0
        %2240 = vmatprep.subr.mxu0 0.0
        %2241 = vmatpush1.msra.mxu0 0.0
        %2242 = vmatprep.subr.mxu0 0.0
        %2243 = vmatpush1.msra.mxu0 0.0
        %2244 = vmatprep.subr.mxu0 0.0
        %2245 = vmatpush1.msra.mxu0 0.0
        %2246 = vmatprep.subr.mxu0 0.0
        %2247 = vmatpush1.msra.mxu0 0.0
        %2248 = vmatprep.subr.mxu0 0.0
        %2249 = vmatpush1.msra.mxu0 0.0
        %2250 = vmatprep.subr.mxu0 0.0
        %2251 = vmatpush1.msra.mxu0 0.0
        %2252 = vmatprep.subr.mxu0 0.0
        %2253 = vmatpush1.msra.mxu0 0.0
        %2254 = vmatprep.subr.mxu0 0.0
        %2255 = vmatpush1.msra.mxu0 0.0
        %2256 = vmatprep.subr.mxu0 0.0
        %2257 = vmatpush1.msra.mxu0 0.0
        %2258 = vmatprep.subr.mxu0 0.0
        %2259 = vmatpush1.msra.mxu0 0.0
        %2260 = vmatprep.subr.mxu0 0.0
        %2261 = vmatpush1.msra.mxu0 0.0
        %2262 = vmatprep.subr.mxu0 0.0
        %2263 = vmatpush1.msra.mxu0 0.0
        %2264 = vmatprep.subr.mxu0 0.0
        %2265 = vmatpush1.msra.mxu0 0.0
        %2266 = vmatprep.subr.mxu0 0.0
        %2267 = vmatpush1.msra.mxu0 0.0
        %2268 = vmatprep.subr.mxu0 0.0
        %2269 = vmatpush1.msra.mxu0 0.0
        %2270 = vmatprep.subr.mxu0 0.0
        %2271 = vmatpush1.msra.mxu0 0.0
        %2272 = vmatprep.subr.mxu0 0.0
        %2273 = vmatpush1.msra.mxu0 0.0
        %2274 = vmatprep.subr.mxu0 0.0
        %2275 = vmatpush1.msra.mxu0 0.0
        %2276 = vmatprep.mubr.f32.mxu0 0.0
        %2277 = vmatmul.mubr.f32.gmra.mrb[0].mxu0 %v2210
        %v2278 = vpop.f32.mrb[0].mxu0
        %v2279 = vadd.f32 %v2206, %v2278
        %v2280 = vpop.f32.mrb[0].mxu0
        %v2281 = vadd.f32 %v2206, %v2280
        %2282 = vdwg.mxu0
        %2283 = vmatprep.subr.mxu0 %v2125
        %2284 = vmatpush1.msra.mxu0 %v2124
        %2285 = vmatprep.subr.mxu0 %v2133
        %2286 = vmatpush1.msra.mxu0 %v2132
        %2287 = vmatprep.subr.mxu0 %v2141
        %2288 = vmatpush1.msra.mxu0 %v2140
        %2289 = vmatprep.subr.mxu0 %v2149
        %2290 = vmatpush1.msra.mxu0 %v2148
        %2291 = vmatprep.subr.mxu0 %v2157
        %2292 = vmatpush1.msra.mxu0 %v2156
        %2293 = vmatprep.subr.mxu0 %v2165
        %2294 = vmatpush1.msra.mxu0 %v2164
        %2295 = vmatprep.subr.mxu0 %v2173
        %2296 = vmatpush1.msra.mxu0 %v2172
        %2297 = vmatprep.subr.mxu0 %v2181
        %2298 = vmatpush1.msra.mxu0 %v2180
        %2299 = vmatprep.subr.mxu0 %v2189
        %2300 = vmatpush1.msra.mxu0 %v2188
        %2301 = vmatprep.subr.mxu0 %v2197
        %2302 = vmatpush1.msra.mxu0 %v2196
        %2303 = vmatprep.subr.mxu0 0.0
        %2304 = vmatpush1.msra.mxu0 0.0
        %2305 = vmatprep.subr.mxu0 0.0
        %2306 = vmatpush1.msra.mxu0 0.0
        %2307 = vmatprep.subr.mxu0 0.0
        %2308 = vmatpush1.msra.mxu0 0.0
        %2309 = vmatprep.subr.mxu0 0.0
        %2310 = vmatpush1.msra.mxu0 0.0
        %2311 = vmatprep.subr.mxu0 0.0
        %2312 = vmatpush1.msra.mxu0 0.0
        %2313 = vmatprep.subr.mxu0 0.0
        %2314 = vmatpush1.msra.mxu0 0.0
        %2315 = vmatprep.subr.mxu0 0.0
        %2316 = vmatpush1.msra.mxu0 0.0
        %2317 = vmatprep.subr.mxu0 0.0
        %2318 = vmatpush1.msra.mxu0 0.0
        %2319 = vmatprep.subr.mxu0 0.0
        %2320 = vmatpush1.msra.mxu0 0.0
        %2321 = vmatprep.subr.mxu0 0.0
        %2322 = vmatpush1.msra.mxu0 0.0
        %2323 = vmatprep.subr.mxu0 0.0
        %2324 = vmatpush1.msra.mxu0 0.0
        %2325 = vmatprep.subr.mxu0 0.0
        %2326 = vmatpush1.msra.mxu0 0.0
        %2327 = vmatprep.subr.mxu0 0.0
        %2328 = vmatpush1.msra.mxu0 0.0
        %2329 = vmatprep.subr.mxu0 0.0
        %2330 = vmatpush1.msra.mxu0 0.0
        %2331 = vmatprep.subr.mxu0 0.0
        %2332 = vmatpush1.msra.mxu0 0.0
        %2333 = vmatprep.subr.mxu0 0.0
        %2334 = vmatpush1.msra.mxu0 0.0
        %2335 = vmatprep.subr.mxu0 0.0
        %2336 = vmatpush1.msra.mxu0 0.0
        %2337 = vmatprep.subr.mxu0 0.0
        %2338 = vmatpush1.msra.mxu0 0.0
        %2339 = vmatprep.subr.mxu0 0.0
        %2340 = vmatpush1.msra.mxu0 0.0
        %2341 = vmatprep.subr.mxu0 0.0
        %2342 = vmatpush1.msra.mxu0 0.0
        %2343 = vmatprep.subr.mxu0 0.0
        %2344 = vmatpush1.msra.mxu0 0.0
        %2345 = vmatprep.subr.mxu0 0.0
        %2346 = vmatpush1.msra.mxu0 0.0
        %2347 = vmatprep.mubr.f32.mxu0 0.0
        %2348 = vmatmul.mubr.f32.gmra.mrb[0].mxu0 %v2210
        %v2349 = vpop.f32.mrb[0].mxu0
        %v2350 = vadd.f32 %v2206, %v2349
        %v2351 = vpop.f32.mrb[0].mxu0
        %v2352 = vadd.f32 %v2206, %v2351
        %2353 = vdwg.mxu0
        %2354 = vmatprep.subr.mxu0 %v2127
        %2355 = vmatpush1.msra.mxu0 %v2126
        %2356 = vmatprep.subr.mxu0 %v2135
        %2357 = vmatpush1.msra.mxu0 %v2134
        %2358 = vmatprep.subr.mxu0 %v2143
        %2359 = vmatpush1.msra.mxu0 %v2142
        %2360 = vmatprep.subr.mxu0 %v2151
        %2361 = vmatpush1.msra.mxu0 %v2150
        %2362 = vmatprep.subr.mxu0 %v2159
        %2363 = vmatpush1.msra.mxu0 %v2158
        %2364 = vmatprep.subr.mxu0 %v2167
        %2365 = vmatpush1.msra.mxu0 %v2166
        %2366 = vmatprep.subr.mxu0 %v2175
        %2367 = vmatpush1.msra.mxu0 %v2174
        %2368 = vmatprep.subr.mxu0 %v2183
        %2369 = vmatpush1.msra.mxu0 %v2182
        %2370 = vmatprep.subr.mxu0 %v2191
        %2371 = vmatpush1.msra.mxu0 %v2190
        %2372 = vmatprep.subr.mxu0 %v2199
        %2373 = vmatpush1.msra.mxu0 %v2198
        %2374 = vmatprep.subr.mxu0 0.0
        %2375 = vmatpush1.msra.mxu0 0.0
        %2376 = vmatprep.subr.mxu0 0.0
        %2377 = vmatpush1.msra.mxu0 0.0
        %2378 = vmatprep.subr.mxu0 0.0
        %2379 = vmatpush1.msra.mxu0 0.0
        %2380 = vmatprep.subr.mxu0 0.0
        %2381 = vmatpush1.msra.mxu0 0.0
        %2382 = vmatprep.subr.mxu0 0.0
        %2383 = vmatpush1.msra.mxu0 0.0
        %2384 = vmatprep.subr.mxu0 0.0
        %2385 = vmatpush1.msra.mxu0 0.0
        %2386 = vmatprep.subr.mxu0 0.0
        %2387 = vmatpush1.msra.mxu0 0.0
        %2388 = vmatprep.subr.mxu0 0.0
        %2389 = vmatpush1.msra.mxu0 0.0
        %2390 = vmatprep.subr.mxu0 0.0
        %2391 = vmatpush1.msra.mxu0 0.0
        %2392 = vmatprep.subr.mxu0 0.0
        %2393 = vmatpush1.msra.mxu0 0.0
        %2394 = vmatprep.subr.mxu0 0.0
        %2395 = vmatpush1.msra.mxu0 0.0
        %2396 = vmatprep.subr.mxu0 0.0
        %2397 = vmatpush1.msra.mxu0 0.0
        %2398 = vmatprep.subr.mxu0 0.0
        %2399 = vmatpush1.msra.mxu0 0.0
        %2400 = vmatprep.subr.mxu0 0.0
        %2401 = vmatpush1.msra.mxu0 0.0
        %2402 = vmatprep.subr.mxu0 0.0
        %2403 = vmatpush1.msra.mxu0 0.0
        %2404 = vmatprep.subr.mxu0 0.0
        %2405 = vmatpush1.msra.mxu0 0.0
        %2406 = vmatprep.subr.mxu0 0.0
        %2407 = vmatpush1.msra.mxu0 0.0
        %2408 = vmatprep.subr.mxu0 0.0
        %2409 = vmatpush1.msra.mxu0 0.0
        %2410 = vmatprep.subr.mxu0 0.0
        %2411 = vmatpush1.msra.mxu0 0.0
        %2412 = vmatprep.subr.mxu0 0.0
        %2413 = vmatpush1.msra.mxu0 0.0
        %2414 = vmatprep.subr.mxu0 0.0
        %2415 = vmatpush1.msra.mxu0 0.0
        %2416 = vmatprep.subr.mxu0 0.0
        %2417 = vmatpush1.msra.mxu0 0.0
        %2418 = vmatprep.mubr.f32.mxu0 0.0
        %2419 = vmatmul.mubr.f32.gmra.mrb[0].mxu0 %v2210
        %v2420 = vpop.f32.mrb[0].mxu0
        %v2421 = vadd.f32 %v2206, %v2420
        %v2422 = vpop.f32.mrb[0].mxu0
        %v2423 = vadd.f32 %v2206, %v2422
        %2424 = vdwg.mxu0
        %2425 = vmatprep.subr.mxu0 %v2129
        %2426 = vmatpush1.msra.mxu0 %v2128
        %2427 = vmatprep.subr.mxu0 %v2137
        %2428 = vmatpush1.msra.mxu0 %v2136
        %2429 = vmatprep.subr.mxu0 %v2145
        %2430 = vmatpush1.msra.mxu0 %v2144
        %2431 = vmatprep.subr.mxu0 %v2153
        %2432 = vmatpush1.msra.mxu0 %v2152
        %2433 = vmatprep.subr.mxu0 %v2161
        %2434 = vmatpush1.msra.mxu0 %v2160
        %2435 = vmatprep.subr.mxu0 %v2169
        %2436 = vmatpush1.msra.mxu0 %v2168
        %2437 = vmatprep.subr.mxu0 %v2177
        %2438 = vmatpush1.msra.mxu0 %v2176
        %2439 = vmatprep.subr.mxu0 %v2185
        %2440 = vmatpush1.msra.mxu0 %v2184
        %2441 = vmatprep.subr.mxu0 %v2193
        %2442 = vmatpush1.msra.mxu0 %v2192
        %2443 = vmatprep.subr.mxu0 %v2201
        %2444 = vmatpush1.msra.mxu0 %v2200
        %2445 = vmatprep.subr.mxu0 0.0
        %2446 = vmatpush1.msra.mxu0 0.0
        %2447 = vmatprep.subr.mxu0 0.0
        %2448 = vmatpush1.msra.mxu0 0.0
        %2449 = vmatprep.subr.mxu0 0.0
        %2450 = vmatpush1.msra.mxu0 0.0
        %2451 = vmatprep.subr.mxu0 0.0
        %2452 = vmatpush1.msra.mxu0 0.0
        %2453 = vmatprep.subr.mxu0 0.0
        %2454 = vmatpush1.msra.mxu0 0.0
        %2455 = vmatprep.subr.mxu0 0.0
        %2456 = vmatpush1.msra.mxu0 0.0
        %2457 = vmatprep.subr.mxu0 0.0
        %2458 = vmatpush1.msra.mxu0 0.0
        %2459 = vmatprep.subr.mxu0 0.0
        %2460 = vmatpush1.msra.mxu0 0.0
        %2461 = vmatprep.subr.mxu0 0.0
        %2462 = vmatpush1.msra.mxu0 0.0
        %2463 = vmatprep.subr.mxu0 0.0
        %2464 = vmatpush1.msra.mxu0 0.0
        %2465 = vmatprep.subr.mxu0 0.0
        %2466 = vmatpush1.msra.mxu0 0.0
        %2467 = vmatprep.subr.mxu0 0.0
        %2468 = vmatpush1.msra.mxu0 0.0
        %2469 = vmatprep.subr.mxu0 0.0
        %2470 = vmatpush1.msra.mxu0 0.0
        %2471 = vmatprep.subr.mxu0 0.0
        %2472 = vmatpush1.msra.mxu0 0.0
        %2473 = vmatprep.subr.mxu0 0.0
        %2474 = vmatpush1.msra.mxu0 0.0
        %2475 = vmatprep.subr.mxu0 0.0
        %2476 = vmatpush1.msra.mxu0 0.0
        %2477 = vmatprep.subr.mxu0 0.0
        %2478 = vmatpush1.msra.mxu0 0.0
        %2479 = vmatprep.subr.mxu0 0.0
        %2480 = vmatpush1.msra.mxu0 0.0
        %2481 = vmatprep.subr.mxu0 0.0
        %2482 = vmatpush1.msra.mxu0 0.0
        %2483 = vmatprep.subr.mxu0 0.0
        %2484 = vmatpush1.msra.mxu0 0.0
        %2485 = vmatprep.subr.mxu0 0.0
        %2486 = vmatpush1.msra.mxu0 0.0
        %2487 = vmatprep.subr.mxu0 0.0
        %2488 = vmatpush1.msra.mxu0 0.0
        %2489 = vmatprep.mubr.f32.mxu0 0.0
        %2490 = vmatmul.mubr.f32.gmra.mrb[0].mxu0 %v2210
        %v2491 = vpop.f32.mrb[0].mxu0
        %v2492 = vadd.f32 %v2206, %v2491
        %v2493 = vpop.f32.mrb[0].mxu0
        %v2494 = vadd.f32 %v2206, %v2493
        %2495 = vdwg.mxu0
        %2496 = vst [vmem:[%s178] sm:$0xff] %v2279
        %2497 = vst [vmem:[%s178 + $0x8] sm:$0xff] %v2281
        %2498 = vst [vmem:[%s178 + $0x10] sm:$0xff] %v2350
        %2499 = vst [vmem:[%s178 + $0x18] sm:$0xff] %v2352
        %2500 = vst [vmem:[%s178 + $0x20] sm:$0xff] %v2421
        %2501 = vst [vmem:[%s178 + $0x28] sm:$0xff] %v2423
        %2502 = vst [vmem:[%s178 + $0x30] sm:$0xff] %v2492
        %2503 = vst [vmem:[%s178 + $0x38] sm:$0xff] %v2494
        %s2504 = sand.u32 %s104, 1
        %s2505 = scalar_lea.sflag [#allocation7], %s2504
        %s2506 = sand.u32 %s104, 1
        %s2507 = smul.addr %s2506, 64
        %s2508 = scalar_lea.vmem [#allocation8], %s2507
        // Predicated region
        $region81: #{tpu_custom_call.1} parent=31 // pred_check
          %p2509 = pneg %p114
        $region82: #{tpu_custom_call.1} parent=31 // pred_check_branch
          %2511 = sbr.rel (%p2509) target = $region84
        $region83: #{tpu_custom_call.1} parent=31 // pred_region
          %s2512 = smul.u32 8, %s24
          %s2514 = ssub.s32 1024, 1024
          %2515 = vsyncadd %s2505, %s2514
          %s2516 = smul.addr %s23, 32
          %s2517 = sadd.s32 %s2512, %s2516
          %s2518 = smul.addr %s2517, 128
          %s2519 = scalar_lea.hbm %s4, %s2518
          %s2521 = sshll.u32 %s2508, 4
          %s2522 = int_to_ptr.vmem [resolvable:$true] %s2521
          %2524 = dma.vmem_to_hbm [thread:$0]  %s2522, 1024, %s2519, %s2505
        $region84: #{tpu_custom_call.1} parent=31 // pred_fallthru
          _
      $region32: #{tpu_custom_call.1} parent=5 // pred_fallthru
        _
      %p2525 = scmp.le.s32.totalorder 2, %s14
      // Predicated region
      $region85: #{tpu_custom_call.1} parent=5 // pred_check
        %p2526 = pneg %p2525
      $region86: #{tpu_custom_call.1} parent=5 // pred_check_branch
        %2528 = sbr.rel (%p2526) target = $region88
      $region87: #{tpu_custom_call.1} parent=5 // pred_region
        %s2529 = ssub.s32 %s14, 2
        // Predicated region
        $region89: #{tpu_custom_call.1} parent=87 // pred_check
          %p2530 = pneg %p120
        $region90: #{tpu_custom_call.1} parent=87 // pred_check_branch
          %2532 = sbr.rel (%p2530) target = $region92
        $region91: #{tpu_custom_call.1} parent=87 // pred_region
          %s2533 = sand.u32 %s105, 1
          %s2534 = scalar_lea.sflag [#allocation7], %s2533
          %s2535 = sand.u32 %s105, 1
          %s2536 = smul.addr %s2535, 64
          %s2537 = scalar_lea.vmem [#allocation8], %s2536
          %2538 = dma.done %s2534, 1024
        $region92: #{tpu_custom_call.1} parent=87 // pred_fallthru
          _
      $region88: #{tpu_custom_call.1} parent=5 // pred_fallthru
        _
    $region6: #{tpu_custom_call.1} parent=1 // loop_footer
      %s18 = sadd.s32 1, %s14
    $region7: #{tpu_custom_call.1} parent=1 // loop_footer_branch
      %13 = sbr.rel target = $region3
    $region8: #{tpu_custom_call.1} parent=1 // loop_exit
      _
    %2539 = vsyncpa [#allocation6], 1
    %s2540 = scalar_lea.sflag [#allocation6], 1
    %2541 = vsyncpa %s2540, 1
    %2542 = vsyncpa [#allocation7], 1
    %s2543 = scalar_lea.sflag [#allocation7], 1
    %2544 = vsyncpa %s2543, 1
  %2545 = vsyncmov [#allocation3]
  %s2546 = vpop.sfrf %2545
  %p2547 = scmp.eq.s32.totalorder %s2546, 0
  %p2548 = pneg %p2547
  %2550 = shalt.err (%p2548)
  %s2551 = scalar_lea.sflag [#allocation3], 1
  %2552 = vsyncmov %s2551
  %s2553 = vpop.sfrf %2552
  %p2554 = scmp.eq.s32.totalorder %s2553, 0
  %p2555 = pneg %p2554
  %2557 = shalt.err (%p2555)

</llo_original>
